<compile_context>
chip_gen: v6e
topology: v6e:2x2x1
jax: 0.10.0
libtpu: 0.0.40
codegen_flags: <defaults>
</compile_context>

<pallas_src>
import jax
import jax.numpy as jnp
from jax.experimental import pallas as pl
from jax.experimental.pallas import tpu as pltpu


def rnn_kernel(x_tb_ref,     # (T*B, 1) f32  time-major inputs: row t*B+b = x[b, t]
               wie_ref,      # (1, 4H)  f32  encoder W_ih^T            (g-cols pre-scaled by 2)
               whe_ref,      # (H, 4H)  mm   encoder W_hh^T            (g-cols pre-scaled by 2)
               be_ref,       # (1, 4H)  f32  encoder bias b_ih + b_hh  (g-cols pre-scaled by 2)
               wfold_ref,    # (H, 4H)  mm   W_dense^T @ W_ih^T        (g-cols pre-scaled by 2)
               brec_ref,     # (1, 4H)  f32  b_enc + b_dense * W_ih^T  (g-cols pre-scaled by 2)
               wdense_ref,   # (H, 1)   f32  dense Linear(H, 1)
               bdense_ref,   # (1, 1)   f32
               out_ref):     # (B, P)   f32
    B, P = out_ref.shape
    TB = x_tb_ref.shape[0]
    T = TB // B
    H = whe_ref.shape[0]
    G = 4 * H
    mm_dtype = whe_ref.dtype          # matmul-operand dtype (bf16 perf / f32 exact)

    whe = whe_ref[...]
    wfold = wfold_ref[...]
    wdense = wdense_ref[...]

    # All T encoder input-gate contributions in ONE (T*B,1)@(1,4H) matmul
    # (+ encoder bias); per-step reads below are aligned sublane slabs (free).
    xg_all = (jnp.dot(x_tb_ref[...], wie_ref[...],
                      preferred_element_type=jnp.float32)
              + jnp.broadcast_to(be_ref[...], (TB, G)))

    def gate_act(gates):
        # Single wide EUP pass: since the g-gate columns of every weight/bias
        # were pre-scaled by 2 on the host, tanh(x) = 2*sigmoid(2x) - 1 is
        # recovered from the same sigmoid; i/f/o read their columns directly.
        sig = jax.nn.sigmoid(gates)
        i = sig[:, 0 * H:1 * H]
        f = sig[:, 1 * H:2 * H]
        g = 2.0 * sig[:, 2 * H:3 * H] - 1.0
        o = sig[:, 3 * H:4 * H]
        return i, f, g, o

    # ---- encoder recurrence (serial, unrolled); t = 0 peeled (h = c = 0) ----
    i, f, g, o = gate_act(xg_all[0:B, :])
    c = i * g
    h = o * jnp.tanh(c)
    for t in range(1, T):
        gates = xg_all[t * B:(t + 1) * B, :] + jnp.dot(
            h.astype(mm_dtype), whe, preferred_element_type=jnp.float32)
        i, f, g, o = gate_act(gates)
        c = f * c + i * g
        h = o * jnp.tanh(c)

    # ---- autoregressive decode (serial, unrolled) ----
    # The PyTorch decoder LSTMCell state never reaches the output -> elided.
    # The re-encode cell uses the frozen (h, c): its h-contribution plus all
    # biases (encoder + folded dense) collapse into one hoisted constant.
    rec_const = (jnp.dot(h.astype(mm_dtype), whe,
                         preferred_element_type=jnp.float32)
                 + jnp.broadcast_to(brec_ref[...], (B, G)))

    x_cur = h
    xs = [x_cur]
    for _ in range(P - 1):
        gates = jnp.dot(x_cur.astype(mm_dtype), wfold,
                        preferred_element_type=jnp.float32) + rec_const
        i, f, g, o = gate_act(gates)
        c_new = f * c + i * g
        x_cur = o * jnp.tanh(c_new)
        xs.append(x_cur)

    # ---- dense outputs: off the recurrence path, ONE stacked matmul ----
    x_stack = jnp.concatenate(xs, axis=0)                          # (P*B, H)
    y_all = (jnp.dot(x_stack, wdense, preferred_element_type=jnp.float32)
             + jnp.broadcast_to(bdense_ref[...], (P * B, 1)))      # (P*B, 1)
    out_ref[...] = jnp.concatenate(
        [y_all[p * B:(p + 1) * B, :] for p in range(P)], axis=1)   # (B, P)


def rnn_forward(x, params, predict_length, matmul_dtype=jnp.bfloat16):
    """Rnn forward pass as a single gridless Pallas kernel.

    matmul_dtype: operand dtype for the recurrent MXU matmuls. bf16 gives a
    single MXU pass per step on v5e/v6e/v7x (f32 accumulation, f32 elementwise
    math); jnp.float32 gives a near bit-exact match to the reference.
    """
    B, T = x.shape
    H = params["w_hh_enc_t"].shape[0]

    # ---- host-side one-time weight prep ----
    # (1) scale the g-gate columns by 2 (enables single-sigmoid gate activation)
    def scale_g(a):
        return a.at[:, 2 * H:3 * H].multiply(2.0)

    wie = scale_g(params["w_ih_enc_t"])                 # (1, 4H)
    whe = scale_g(params["w_hh_enc_t"])                 # (H, 4H)
    be = scale_g(params["b_enc"])                       # (1, 4H)
    # (2) fold the dense layer into the re-encode input gates
    w_fold = jnp.dot(params["w_dense_t"], wie)          # (H, 4H)
    b_rec = be + params["b_dense"] * wie                # (1, 4H)
    # (3) time-major input so the kernel reads per-step slabs along sublanes
    x_tb = x.T.reshape(T * B, 1)

    inputs = (x_tb, wie, whe.astype(matmul_dtype), be,
              w_fold.astype(matmul_dtype), b_rec,
              params["w_dense_t"], params["b_dense"])

    return pl.pallas_call(
        rnn_kernel,
        out_shape=jax.ShapeDtypeStruct((B, predict_length), jnp.float32),
        in_specs=[pl.BlockSpec(memory_space=pltpu.MemorySpace.VMEM)] * len(inputs),
        out_specs=pl.BlockSpec(memory_space=pltpu.MemorySpace.VMEM),
    )(*inputs)


def init_params(key, hidden):
    """Deterministic parameter init matching torch.nn.LSTMCell / Linear shapes."""
    k = 1.0 / jnp.sqrt(jnp.float32(hidden))
    keys = jax.random.split(key, 10)

    def u(kk, shape):
        return jax.random.uniform(kk, shape, jnp.float32, minval=-k, maxval=k)

    H = hidden
    # encoder: LSTMCell(1, H) -> W_ih (4H,1), W_hh (4H,H), b_ih (4H,), b_hh (4H,)
    w_ih_enc = u(keys[0], (4 * H, 1))
    w_hh_enc = u(keys[1], (4 * H, H))
    b_enc = u(keys[2], (4 * H,)) + u(keys[3], (4 * H,))
    # decoder: LSTMCell(H, H) (kept for module fidelity; its state never reaches
    # the forward output, so the kernel does not consume it)
    w_ih_dec = u(keys[4], (4 * H, H))
    w_hh_dec = u(keys[5], (4 * H, H))
    b_dec = u(keys[6], (4 * H,)) + u(keys[7], (4 * H,))
    # dense: Linear(H, 1)
    w_dense = u(keys[8], (1, H))
    b_dense = u(keys[9], (1,))

    return {
        "w_ih_enc_t": jnp.transpose(w_ih_enc),          # (1, 4H)
        "w_hh_enc_t": jnp.transpose(w_hh_enc),          # (H, 4H)
        "b_enc": b_enc.reshape(1, 4 * H),
        "w_ih_dec_t": jnp.transpose(w_ih_dec),          # (H, 4H)
        "w_hh_dec_t": jnp.transpose(w_hh_dec),          # (H, 4H)
        "b_dec": b_dec.reshape(1, 4 * H),
        "w_dense_t": jnp.transpose(w_dense),            # (H, 1)
        "b_dense": b_dense.reshape(1, 1),
    }


def _lstm_cell_ref(x_t, h, c, w_ih_t, w_hh_t, b):
    """PyTorch LSTMCell semantics, pure JAX (reference only)."""
    H = h.shape[1]
    gates = x_t @ w_ih_t + h @ w_hh_t + b
    i = jax.nn.sigmoid(gates[:, 0 * H:1 * H])
    f = jax.nn.sigmoid(gates[:, 1 * H:2 * H])
    g = jnp.tanh(gates[:, 2 * H:3 * H])
    o = jax.nn.sigmoid(gates[:, 3 * H:4 * H])
    c_new = f * c + i * g
    h_new = o * jnp.tanh(c_new)
    return h_new, c_new


def rnn_reference(x, params, predict_length):
    """Pure-JAX mirror of the PyTorch forward (decoder cell included, unused)."""
    B, T = x.shape
    H = params["w_hh_enc_t"].shape[0]
    h = jnp.zeros((B, H), jnp.float32)
    c = jnp.zeros((B, H), jnp.float32)
    for t in range(T):
        h, c = _lstm_cell_ref(x[:, t:t + 1], h, c,
                              params["w_ih_enc_t"], params["w_hh_enc_t"], params["b_enc"])
    nh, nc = h, c
    x_cur = h
    outs = []
    for _ in range(predict_length):
        nh, nc = _lstm_cell_ref(x_cur, nh, nc,
                                params["w_ih_dec_t"], params["w_hh_dec_t"], params["b_dec"])
        y = x_cur @ params["w_dense_t"] + params["b_dense"]
        outs.append(y)
        x_cur = _lstm_cell_ref(y, h, c,
                               params["w_ih_enc_t"], params["w_hh_enc_t"], params["b_enc"])[0]
    return jnp.concatenate(outs, axis=1)


if __name__ == "__main__":
    B, T, H, P = 8, 8, 32, 4          # batch, seq length, hidden, predict_length

    key = jax.random.PRNGKey(0)
    k_x, k_p = jax.random.split(key)
    x = jax.random.normal(k_x, (B, T), jnp.float32)
    params = init_params(k_p, H)

    ref = rnn_reference(x, params, P)

    # f32 matmul operands: near bit-exact vs the pure-JAX (PyTorch-faithful) reference.
    out_f32 = rnn_forward(x, params, P, matmul_dtype=jnp.float32)
    jax.block_until_ready(out_f32)
    assert out_f32.shape == (B, P)
    assert jnp.allclose(out_f32, ref, atol=5e-3, rtol=5e-3), \
        "Pallas (f32 matmul) output mismatch vs JAX reference"

    # bf16 matmul operands (perf default: single-pass MXU on v5e/v6e/v7x).
    out_bf16 = rnn_forward(x, params, P)
    jax.block_until_ready(out_bf16)
    assert out_bf16.shape == (B, P)
    assert jnp.allclose(out_bf16, ref, atol=5e-2, rtol=5e-2), \
        "Pallas (bf16 matmul) output drift too large vs JAX reference"

    print("KERNEL_OK")
</pallas_src>

<mosaic_0001>
module attributes {stable_mosaic.version = 11 : i64} {
  func.func @rnn_kernel(%arg0: memref<64x1xf32, #tpu.memory_space<vmem>>, %arg1: memref<1x128xf32, #tpu.memory_space<vmem>>, %arg2: memref<32x128xf32, #tpu.memory_space<vmem>>, %arg3: memref<1x128xf32, #tpu.memory_space<vmem>>, %arg4: memref<32x128xf32, #tpu.memory_space<vmem>>, %arg5: memref<1x128xf32, #tpu.memory_space<vmem>>, %arg6: memref<32x1xf32, #tpu.memory_space<vmem>>, %arg7: memref<1x1xf32, #tpu.memory_space<vmem>>, %arg8: memref<8x4xf32, #tpu.memory_space<vmem>>) attributes {dimension_semantics = [], scalar_prefetch = 0 : i64, scratch_operands = 0 : i64, tpu.core_type = #tpu.core_type<tc>} {
    %c0 = arith.constant 0 : index
    %c0_0 = arith.constant 0 : index
    %0 = vector.load %arg2[%c0, %c0_0] : memref<32x128xf32, #tpu.memory_space<vmem>>, vector<32x128xf32>
    %c0_1 = arith.constant 0 : index
    %c0_2 = arith.constant 0 : index
    %1 = vector.load %arg4[%c0_1, %c0_2] : memref<32x128xf32, #tpu.memory_space<vmem>>, vector<32x128xf32>
    %c0_3 = arith.constant 0 : index
    %c0_4 = arith.constant 0 : index
    %2 = vector.load %arg6[%c0_3, %c0_4] : memref<32x1xf32, #tpu.memory_space<vmem>>, vector<32x1xf32>
    %c0_5 = arith.constant 0 : index
    %c0_6 = arith.constant 0 : index
    %3 = vector.load %arg0[%c0_5, %c0_6] : memref<64x1xf32, #tpu.memory_space<vmem>>, vector<64x1xf32>
    %c0_7 = arith.constant 0 : index
    %c0_8 = arith.constant 0 : index
    %4 = vector.load %arg1[%c0_7, %c0_8] : memref<1x128xf32, #tpu.memory_space<vmem>>, vector<1x128xf32>
    %cst = arith.constant dense<0.000000e+00> : vector<64x128xf32>
    %5 = tpu.matmul %3, %4, %cst {dimension_numbers = #tpu.dot_dimension_numbers<[1], [0], [0], [1], [0, 0, 1, 1], [], []>} : vector<64x1xf32>, vector<1x128xf32>, vector<64x128xf32> -> vector<64x128xf32>
    %c0_9 = arith.constant 0 : index
    %c0_10 = arith.constant 0 : index
    %6 = vector.load %arg3[%c0_9, %c0_10] : memref<1x128xf32, #tpu.memory_space<vmem>>, vector<1x128xf32>
    %7 = vector.shape_cast %6 : vector<1x128xf32> to vector<1x128xf32>
    %8 = vector.broadcast %7 : vector<1x128xf32> to vector<64x128xf32>
    %9 = arith.addf %5, %8 : vector<64x128xf32>
    %10 = vector.extract_strided_slice %9 {offsets = [0, 0], sizes = [8, 128], strides = [1, 1]} : vector<64x128xf32> to vector<8x128xf32>
    %11 = arith.negf %10 : vector<8x128xf32>
    %12 = math.exp %11 : vector<8x128xf32>
    %cst_11 = arith.constant 1.000000e+00 : f32
    %13 = vector.broadcast %cst_11 : f32 to vector<8x128xf32>
    %14 = arith.addf %13, %12 : vector<8x128xf32>
    %15 = arith.divf %13, %14 : vector<8x128xf32>
    %16 = vector.extract_strided_slice %15 {offsets = [0, 0], sizes = [8, 32], strides = [1, 1]} : vector<8x128xf32> to vector<8x32xf32>
    %17 = vector.extract_strided_slice %15 {offsets = [0, 64], sizes = [8, 32], strides = [1, 1]} : vector<8x128xf32> to vector<8x32xf32>
    %cst_12 = arith.constant 2.000000e+00 : f32
    %18 = vector.broadcast %cst_12 : f32 to vector<8x32xf32>
    %19 = arith.mulf %18, %17 : vector<8x32xf32>
    %cst_13 = arith.constant 1.000000e+00 : f32
    %20 = vector.broadcast %cst_13 : f32 to vector<8x32xf32>
    %21 = arith.subf %19, %20 : vector<8x32xf32>
    %22 = vector.extract_strided_slice %15 {offsets = [0, 96], sizes = [8, 32], strides = [1, 1]} : vector<8x128xf32> to vector<8x32xf32>
    %23 = arith.mulf %16, %21 : vector<8x32xf32>
    %24 = math.tanh %23 : vector<8x32xf32>
    %25 = arith.mulf %22, %24 : vector<8x32xf32>
    %26 = vector.extract_strided_slice %9 {offsets = [8, 0], sizes = [8, 128], strides = [1, 1]} : vector<64x128xf32> to vector<8x128xf32>
    %cst_14 = arith.constant dense<0.000000e+00> : vector<8x128xf32>
    %27 = tpu.matmul %25, %0, %cst_14 {dimension_numbers = #tpu.dot_dimension_numbers<[1], [0], [0], [1], [0, 0, 1, 1], [], []>} : vector<8x32xf32>, vector<32x128xf32>, vector<8x128xf32> -> vector<8x128xf32>
    %28 = arith.addf %26, %27 : vector<8x128xf32>
    %29 = arith.negf %28 : vector<8x128xf32>
    %30 = math.exp %29 : vector<8x128xf32>
    %cst_15 = arith.constant 1.000000e+00 : f32
    %31 = vector.broadcast %cst_15 : f32 to vector<8x128xf32>
    %32 = arith.addf %31, %30 : vector<8x128xf32>
    %33 = arith.divf %31, %32 : vector<8x128xf32>
    %34 = vector.extract_strided_slice %33 {offsets = [0, 0], sizes = [8, 32], strides = [1, 1]} : vector<8x128xf32> to vector<8x32xf32>
    %35 = vector.extract_strided_slice %33 {offsets = [0, 32], sizes = [8, 32], strides = [1, 1]} : vector<8x128xf32> to vector<8x32xf32>
    %36 = vector.extract_strided_slice %33 {offsets = [0, 64], sizes = [8, 32], strides = [1, 1]} : vector<8x128xf32> to vector<8x32xf32>
    %cst_16 = arith.constant 2.000000e+00 : f32
    %37 = vector.broadcast %cst_16 : f32 to vector<8x32xf32>
    %38 = arith.mulf %37, %36 : vector<8x32xf32>
    %cst_17 = arith.constant 1.000000e+00 : f32
    %39 = vector.broadcast %cst_17 : f32 to vector<8x32xf32>
    %40 = arith.subf %38, %39 : vector<8x32xf32>
    %41 = vector.extract_strided_slice %33 {offsets = [0, 96], sizes = [8, 32], strides = [1, 1]} : vector<8x128xf32> to vector<8x32xf32>
    %42 = arith.mulf %35, %23 : vector<8x32xf32>
    %43 = arith.mulf %34, %40 : vector<8x32xf32>
    %44 = arith.addf %42, %43 : vector<8x32xf32>
    %45 = math.tanh %44 : vector<8x32xf32>
    %46 = arith.mulf %41, %45 : vector<8x32xf32>
    %47 = vector.extract_strided_slice %9 {offsets = [16, 0], sizes = [8, 128], strides = [1, 1]} : vector<64x128xf32> to vector<8x128xf32>
    %cst_18 = arith.constant dense<0.000000e+00> : vector<8x128xf32>
    %48 = tpu.matmul %46, %0, %cst_18 {dimension_numbers = #tpu.dot_dimension_numbers<[1], [0], [0], [1], [0, 0, 1, 1], [], []>} : vector<8x32xf32>, vector<32x128xf32>, vector<8x128xf32> -> vector<8x128xf32>
    %49 = arith.addf %47, %48 : vector<8x128xf32>
    %50 = arith.negf %49 : vector<8x128xf32>
    %51 = math.exp %50 : vector<8x128xf32>
    %cst_19 = arith.constant 1.000000e+00 : f32
    %52 = vector.broadcast %cst_19 : f32 to vector<8x128xf32>
    %53 = arith.addf %52, %51 : vector<8x128xf32>
    %54 = arith.divf %52, %53 : vector<8x128xf32>
    %55 = vector.extract_strided_slice %54 {offsets = [0, 0], sizes = [8, 32], strides = [1, 1]} : vector<8x128xf32> to vector<8x32xf32>
    %56 = vector.extract_strided_slice %54 {offsets = [0, 32], sizes = [8, 32], strides = [1, 1]} : vector<8x128xf32> to vector<8x32xf32>
    %57 = vector.extract_strided_slice %54 {offsets = [0, 64], sizes = [8, 32], strides = [1, 1]} : vector<8x128xf32> to vector<8x32xf32>
    %cst_20 = arith.constant 2.000000e+00 : f32
    %58 = vector.broadcast %cst_20 : f32 to vector<8x32xf32>
    %59 = arith.mulf %58, %57 : vector<8x32xf32>
    %cst_21 = arith.constant 1.000000e+00 : f32
    %60 = vector.broadcast %cst_21 : f32 to vector<8x32xf32>
    %61 = arith.subf %59, %60 : vector<8x32xf32>
    %62 = vector.extract_strided_slice %54 {offsets = [0, 96], sizes = [8, 32], strides = [1, 1]} : vector<8x128xf32> to vector<8x32xf32>
    %63 = arith.mulf %56, %44 : vector<8x32xf32>
    %64 = arith.mulf %55, %61 : vector<8x32xf32>
    %65 = arith.addf %63, %64 : vector<8x32xf32>
    %66 = math.tanh %65 : vector<8x32xf32>
    %67 = arith.mulf %62, %66 : vector<8x32xf32>
    %68 = vector.extract_strided_slice %9 {offsets = [24, 0], sizes = [8, 128], strides = [1, 1]} : vector<64x128xf32> to vector<8x128xf32>
    %cst_22 = arith.constant dense<0.000000e+00> : vector<8x128xf32>
    %69 = tpu.matmul %67, %0, %cst_22 {dimension_numbers = #tpu.dot_dimension_numbers<[1], [0], [0], [1], [0, 0, 1, 1], [], []>} : vector<8x32xf32>, vector<32x128xf32>, vector<8x128xf32> -> vector<8x128xf32>
    %70 = arith.addf %68, %69 : vector<8x128xf32>
    %71 = arith.negf %70 : vector<8x128xf32>
    %72 = math.exp %71 : vector<8x128xf32>
    %cst_23 = arith.constant 1.000000e+00 : f32
    %73 = vector.broadcast %cst_23 : f32 to vector<8x128xf32>
    %74 = arith.addf %73, %72 : vector<8x128xf32>
    %75 = arith.divf %73, %74 : vector<8x128xf32>
    %76 = vector.extract_strided_slice %75 {offsets = [0, 0], sizes = [8, 32], strides = [1, 1]} : vector<8x128xf32> to vector<8x32xf32>
    %77 = vector.extract_strided_slice %75 {offsets = [0, 32], sizes = [8, 32], strides = [1, 1]} : vector<8x128xf32> to vector<8x32xf32>
    %78 = vector.extract_strided_slice %75 {offsets = [0, 64], sizes = [8, 32], strides = [1, 1]} : vector<8x128xf32> to vector<8x32xf32>
    %cst_24 = arith.constant 2.000000e+00 : f32
    %79 = vector.broadcast %cst_24 : f32 to vector<8x32xf32>
    %80 = arith.mulf %79, %78 : vector<8x32xf32>
    %cst_25 = arith.constant 1.000000e+00 : f32
    %81 = vector.broadcast %cst_25 : f32 to vector<8x32xf32>
    %82 = arith.subf %80, %81 : vector<8x32xf32>
    %83 = vector.extract_strided_slice %75 {offsets = [0, 96], sizes = [8, 32], strides = [1, 1]} : vector<8x128xf32> to vector<8x32xf32>
    %84 = arith.mulf %77, %65 : vector<8x32xf32>
    %85 = arith.mulf %76, %82 : vector<8x32xf32>
    %86 = arith.addf %84, %85 : vector<8x32xf32>
    %87 = math.tanh %86 : vector<8x32xf32>
    %88 = arith.mulf %83, %87 : vector<8x32xf32>
    %89 = vector.extract_strided_slice %9 {offsets = [32, 0], sizes = [8, 128], strides = [1, 1]} : vector<64x128xf32> to vector<8x128xf32>
    %cst_26 = arith.constant dense<0.000000e+00> : vector<8x128xf32>
    %90 = tpu.matmul %88, %0, %cst_26 {dimension_numbers = #tpu.dot_dimension_numbers<[1], [0], [0], [1], [0, 0, 1, 1], [], []>} : vector<8x32xf32>, vector<32x128xf32>, vector<8x128xf32> -> vector<8x128xf32>
    %91 = arith.addf %89, %90 : vector<8x128xf32>
    %92 = arith.negf %91 : vector<8x128xf32>
    %93 = math.exp %92 : vector<8x128xf32>
    %cst_27 = arith.constant 1.000000e+00 : f32
    %94 = vector.broadcast %cst_27 : f32 to vector<8x128xf32>
    %95 = arith.addf %94, %93 : vector<8x128xf32>
    %96 = arith.divf %94, %95 : vector<8x128xf32>
    %97 = vector.extract_strided_slice %96 {offsets = [0, 0], sizes = [8, 32], strides = [1, 1]} : vector<8x128xf32> to vector<8x32xf32>
    %98 = vector.extract_strided_slice %96 {offsets = [0, 32], sizes = [8, 32], strides = [1, 1]} : vector<8x128xf32> to vector<8x32xf32>
    %99 = vector.extract_strided_slice %96 {offsets = [0, 64], sizes = [8, 32], strides = [1, 1]} : vector<8x128xf32> to vector<8x32xf32>
    %cst_28 = arith.constant 2.000000e+00 : f32
    %100 = vector.broadcast %cst_28 : f32 to vector<8x32xf32>
    %101 = arith.mulf %100, %99 : vector<8x32xf32>
    %cst_29 = arith.constant 1.000000e+00 : f32
    %102 = vector.broadcast %cst_29 : f32 to vector<8x32xf32>
    %103 = arith.subf %101, %102 : vector<8x32xf32>
    %104 = vector.extract_strided_slice %96 {offsets = [0, 96], sizes = [8, 32], strides = [1, 1]} : vector<8x128xf32> to vector<8x32xf32>
    %105 = arith.mulf %98, %86 : vector<8x32xf32>
    %106 = arith.mulf %97, %103 : vector<8x32xf32>
    %107 = arith.addf %105, %106 : vector<8x32xf32>
    %108 = math.tanh %107 : vector<8x32xf32>
    %109 = arith.mulf %104, %108 : vector<8x32xf32>
    %110 = vector.extract_strided_slice %9 {offsets = [40, 0], sizes = [8, 128], strides = [1, 1]} : vector<64x128xf32> to vector<8x128xf32>
    %cst_30 = arith.constant dense<0.000000e+00> : vector<8x128xf32>
    %111 = tpu.matmul %109, %0, %cst_30 {dimension_numbers = #tpu.dot_dimension_numbers<[1], [0], [0], [1], [0, 0, 1, 1], [], []>} : vector<8x32xf32>, vector<32x128xf32>, vector<8x128xf32> -> vector<8x128xf32>
    %112 = arith.addf %110, %111 : vector<8x128xf32>
    %113 = arith.negf %112 : vector<8x128xf32>
    %114 = math.exp %113 : vector<8x128xf32>
    %cst_31 = arith.constant 1.000000e+00 : f32
    %115 = vector.broadcast %cst_31 : f32 to vector<8x128xf32>
    %116 = arith.addf %115, %114 : vector<8x128xf32>
    %117 = arith.divf %115, %116 : vector<8x128xf32>
    %118 = vector.extract_strided_slice %117 {offsets = [0, 0], sizes = [8, 32], strides = [1, 1]} : vector<8x128xf32> to vector<8x32xf32>
    %119 = vector.extract_strided_slice %117 {offsets = [0, 32], sizes = [8, 32], strides = [1, 1]} : vector<8x128xf32> to vector<8x32xf32>
    %120 = vector.extract_strided_slice %117 {offsets = [0, 64], sizes = [8, 32], strides = [1, 1]} : vector<8x128xf32> to vector<8x32xf32>
    %cst_32 = arith.constant 2.000000e+00 : f32
    %121 = vector.broadcast %cst_32 : f32 to vector<8x32xf32>
    %122 = arith.mulf %121, %120 : vector<8x32xf32>
    %cst_33 = arith.constant 1.000000e+00 : f32
    %123 = vector.broadcast %cst_33 : f32 to vector<8x32xf32>
    %124 = arith.subf %122, %123 : vector<8x32xf32>
    %125 = vector.extract_strided_slice %117 {offsets = [0, 96], sizes = [8, 32], strides = [1, 1]} : vector<8x128xf32> to vector<8x32xf32>
    %126 = arith.mulf %119, %107 : vector<8x32xf32>
    %127 = arith.mulf %118, %124 : vector<8x32xf32>
    %128 = arith.addf %126, %127 : vector<8x32xf32>
    %129 = math.tanh %128 : vector<8x32xf32>
    %130 = arith.mulf %125, %129 : vector<8x32xf32>
    %131 = vector.extract_strided_slice %9 {offsets = [48, 0], sizes = [8, 128], strides = [1, 1]} : vector<64x128xf32> to vector<8x128xf32>
    %cst_34 = arith.constant dense<0.000000e+00> : vector<8x128xf32>
    %132 = tpu.matmul %130, %0, %cst_34 {dimension_numbers = #tpu.dot_dimension_numbers<[1], [0], [0], [1], [0, 0, 1, 1], [], []>} : vector<8x32xf32>, vector<32x128xf32>, vector<8x128xf32> -> vector<8x128xf32>
    %133 = arith.addf %131, %132 : vector<8x128xf32>
    %134 = arith.negf %133 : vector<8x128xf32>
    %135 = math.exp %134 : vector<8x128xf32>
    %cst_35 = arith.constant 1.000000e+00 : f32
    %136 = vector.broadcast %cst_35 : f32 to vector<8x128xf32>
    %137 = arith.addf %136, %135 : vector<8x128xf32>
    %138 = arith.divf %136, %137 : vector<8x128xf32>
    %139 = vector.extract_strided_slice %138 {offsets = [0, 0], sizes = [8, 32], strides = [1, 1]} : vector<8x128xf32> to vector<8x32xf32>
    %140 = vector.extract_strided_slice %138 {offsets = [0, 32], sizes = [8, 32], strides = [1, 1]} : vector<8x128xf32> to vector<8x32xf32>
    %141 = vector.extract_strided_slice %138 {offsets = [0, 64], sizes = [8, 32], strides = [1, 1]} : vector<8x128xf32> to vector<8x32xf32>
    %cst_36 = arith.constant 2.000000e+00 : f32
    %142 = vector.broadcast %cst_36 : f32 to vector<8x32xf32>
    %143 = arith.mulf %142, %141 : vector<8x32xf32>
    %cst_37 = arith.constant 1.000000e+00 : f32
    %144 = vector.broadcast %cst_37 : f32 to vector<8x32xf32>
    %145 = arith.subf %143, %144 : vector<8x32xf32>
    %146 = vector.extract_strided_slice %138 {offsets = [0, 96], sizes = [8, 32], strides = [1, 1]} : vector<8x128xf32> to vector<8x32xf32>
    %147 = arith.mulf %140, %128 : vector<8x32xf32>
    %148 = arith.mulf %139, %145 : vector<8x32xf32>
    %149 = arith.addf %147, %148 : vector<8x32xf32>
    %150 = math.tanh %149 : vector<8x32xf32>
    %151 = arith.mulf %146, %150 : vector<8x32xf32>
    %152 = vector.extract_strided_slice %9 {offsets = [56, 0], sizes = [8, 128], strides = [1, 1]} : vector<64x128xf32> to vector<8x128xf32>
    %cst_38 = arith.constant dense<0.000000e+00> : vector<8x128xf32>
    %153 = tpu.matmul %151, %0, %cst_38 {dimension_numbers = #tpu.dot_dimension_numbers<[1], [0], [0], [1], [0, 0, 1, 1], [], []>} : vector<8x32xf32>, vector<32x128xf32>, vector<8x128xf32> -> vector<8x128xf32>
    %154 = arith.addf %152, %153 : vector<8x128xf32>
    %155 = arith.negf %154 : vector<8x128xf32>
    %156 = math.exp %155 : vector<8x128xf32>
    %cst_39 = arith.constant 1.000000e+00 : f32
    %157 = vector.broadcast %cst_39 : f32 to vector<8x128xf32>
    %158 = arith.addf %157, %156 : vector<8x128xf32>
    %159 = arith.divf %157, %158 : vector<8x128xf32>
    %160 = vector.extract_strided_slice %159 {offsets = [0, 0], sizes = [8, 32], strides = [1, 1]} : vector<8x128xf32> to vector<8x32xf32>
    %161 = vector.extract_strided_slice %159 {offsets = [0, 32], sizes = [8, 32], strides = [1, 1]} : vector<8x128xf32> to vector<8x32xf32>
    %162 = vector.extract_strided_slice %159 {offsets = [0, 64], sizes = [8, 32], strides = [1, 1]} : vector<8x128xf32> to vector<8x32xf32>
    %cst_40 = arith.constant 2.000000e+00 : f32
    %163 = vector.broadcast %cst_40 : f32 to vector<8x32xf32>
    %164 = arith.mulf %163, %162 : vector<8x32xf32>
    %cst_41 = arith.constant 1.000000e+00 : f32
    %165 = vector.broadcast %cst_41 : f32 to vector<8x32xf32>
    %166 = arith.subf %164, %165 : vector<8x32xf32>
    %167 = vector.extract_strided_slice %159 {offsets = [0, 96], sizes = [8, 32], strides = [1, 1]} : vector<8x128xf32> to vector<8x32xf32>
    %168 = arith.mulf %161, %149 : vector<8x32xf32>
    %169 = arith.mulf %160, %166 : vector<8x32xf32>
    %170 = arith.addf %168, %169 : vector<8x32xf32>
    %171 = math.tanh %170 : vector<8x32xf32>
    %172 = arith.mulf %167, %171 : vector<8x32xf32>
    %cst_42 = arith.constant dense<0.000000e+00> : vector<8x128xf32>
    %173 = tpu.matmul %172, %0, %cst_42 {dimension_numbers = #tpu.dot_dimension_numbers<[1], [0], [0], [1], [0, 0, 1, 1], [], []>} : vector<8x32xf32>, vector<32x128xf32>, vector<8x128xf32> -> vector<8x128xf32>
    %c0_43 = arith.constant 0 : index
    %c0_44 = arith.constant 0 : index
    %174 = vector.load %arg5[%c0_43, %c0_44] : memref<1x128xf32, #tpu.memory_space<vmem>>, vector<1x128xf32>
    %175 = vector.shape_cast %174 : vector<1x128xf32> to vector<1x128xf32>
    %176 = vector.broadcast %175 : vector<1x128xf32> to vector<8x128xf32>
    %177 = arith.addf %173, %176 : vector<8x128xf32>
    %cst_45 = arith.constant dense<0.000000e+00> : vector<8x128xf32>
    %178 = tpu.matmul %172, %1, %cst_45 {dimension_numbers = #tpu.dot_dimension_numbers<[1], [0], [0], [1], [0, 0, 1, 1], [], []>} : vector<8x32xf32>, vector<32x128xf32>, vector<8x128xf32> -> vector<8x128xf32>
    %179 = arith.addf %178, %177 : vector<8x128xf32>
    %180 = arith.negf %179 : vector<8x128xf32>
    %181 = math.exp %180 : vector<8x128xf32>
    %cst_46 = arith.constant 1.000000e+00 : f32
    %182 = vector.broadcast %cst_46 : f32 to vector<8x128xf32>
    %183 = arith.addf %182, %181 : vector<8x128xf32>
    %184 = arith.divf %182, %183 : vector<8x128xf32>
    %185 = vector.extract_strided_slice %184 {offsets = [0, 0], sizes = [8, 32], strides = [1, 1]} : vector<8x128xf32> to vector<8x32xf32>
    %186 = vector.extract_strided_slice %184 {offsets = [0, 32], sizes = [8, 32], strides = [1, 1]} : vector<8x128xf32> to vector<8x32xf32>
    %187 = vector.extract_strided_slice %184 {offsets = [0, 64], sizes = [8, 32], strides = [1, 1]} : vector<8x128xf32> to vector<8x32xf32>
    %cst_47 = arith.constant 2.000000e+00 : f32
    %188 = vector.broadcast %cst_47 : f32 to vector<8x32xf32>
    %189 = arith.mulf %188, %187 : vector<8x32xf32>
    %cst_48 = arith.constant 1.000000e+00 : f32
    %190 = vector.broadcast %cst_48 : f32 to vector<8x32xf32>
    %191 = arith.subf %189, %190 : vector<8x32xf32>
    %192 = vector.extract_strided_slice %184 {offsets = [0, 96], sizes = [8, 32], strides = [1, 1]} : vector<8x128xf32> to vector<8x32xf32>
    %193 = arith.mulf %186, %170 : vector<8x32xf32>
    %194 = arith.mulf %185, %191 : vector<8x32xf32>
    %195 = arith.addf %193, %194 : vector<8x32xf32>
    %196 = math.tanh %195 : vector<8x32xf32>
    %197 = arith.mulf %192, %196 : vector<8x32xf32>
    %cst_49 = arith.constant dense<0.000000e+00> : vector<8x128xf32>
    %198 = tpu.matmul %197, %1, %cst_49 {dimension_numbers = #tpu.dot_dimension_numbers<[1], [0], [0], [1], [0, 0, 1, 1], [], []>} : vector<8x32xf32>, vector<32x128xf32>, vector<8x128xf32> -> vector<8x128xf32>
    %199 = arith.addf %198, %177 : vector<8x128xf32>
    %200 = arith.negf %199 : vector<8x128xf32>
    %201 = math.exp %200 : vector<8x128xf32>
    %cst_50 = arith.constant 1.000000e+00 : f32
    %202 = vector.broadcast %cst_50 : f32 to vector<8x128xf32>
    %203 = arith.addf %202, %201 : vector<8x128xf32>
    %204 = arith.divf %202, %203 : vector<8x128xf32>
    %205 = vector.extract_strided_slice %204 {offsets = [0, 0], sizes = [8, 32], strides = [1, 1]} : vector<8x128xf32> to vector<8x32xf32>
    %206 = vector.extract_strided_slice %204 {offsets = [0, 32], sizes = [8, 32], strides = [1, 1]} : vector<8x128xf32> to vector<8x32xf32>
    %207 = vector.extract_strided_slice %204 {offsets = [0, 64], sizes = [8, 32], strides = [1, 1]} : vector<8x128xf32> to vector<8x32xf32>
    %cst_51 = arith.constant 2.000000e+00 : f32
    %208 = vector.broadcast %cst_51 : f32 to vector<8x32xf32>
    %209 = arith.mulf %208, %207 : vector<8x32xf32>
    %cst_52 = arith.constant 1.000000e+00 : f32
    %210 = vector.broadcast %cst_52 : f32 to vector<8x32xf32>
    %211 = arith.subf %209, %210 : vector<8x32xf32>
    %212 = vector.extract_strided_slice %204 {offsets = [0, 96], sizes = [8, 32], strides = [1, 1]} : vector<8x128xf32> to vector<8x32xf32>
    %213 = arith.mulf %206, %170 : vector<8x32xf32>
    %214 = arith.mulf %205, %211 : vector<8x32xf32>
    %215 = arith.addf %213, %214 : vector<8x32xf32>
    %216 = math.tanh %215 : vector<8x32xf32>
    %217 = arith.mulf %212, %216 : vector<8x32xf32>
    %cst_53 = arith.constant dense<0.000000e+00> : vector<8x128xf32>
    %218 = tpu.matmul %217, %1, %cst_53 {dimension_numbers = #tpu.dot_dimension_numbers<[1], [0], [0], [1], [0, 0, 1, 1], [], []>} : vector<8x32xf32>, vector<32x128xf32>, vector<8x128xf32> -> vector<8x128xf32>
    %219 = arith.addf %218, %177 : vector<8x128xf32>
    %220 = arith.negf %219 : vector<8x128xf32>
    %221 = math.exp %220 : vector<8x128xf32>
    %cst_54 = arith.constant 1.000000e+00 : f32
    %222 = vector.broadcast %cst_54 : f32 to vector<8x128xf32>
    %223 = arith.addf %222, %221 : vector<8x128xf32>
    %224 = arith.divf %222, %223 : vector<8x128xf32>
    %225 = vector.extract_strided_slice %224 {offsets = [0, 0], sizes = [8, 32], strides = [1, 1]} : vector<8x128xf32> to vector<8x32xf32>
    %226 = vector.extract_strided_slice %224 {offsets = [0, 32], sizes = [8, 32], strides = [1, 1]} : vector<8x128xf32> to vector<8x32xf32>
    %227 = vector.extract_strided_slice %224 {offsets = [0, 64], sizes = [8, 32], strides = [1, 1]} : vector<8x128xf32> to vector<8x32xf32>
    %cst_55 = arith.constant 2.000000e+00 : f32
    %228 = vector.broadcast %cst_55 : f32 to vector<8x32xf32>
    %229 = arith.mulf %228, %227 : vector<8x32xf32>
    %cst_56 = arith.constant 1.000000e+00 : f32
    %230 = vector.broadcast %cst_56 : f32 to vector<8x32xf32>
    %231 = arith.subf %229, %230 : vector<8x32xf32>
    %232 = vector.extract_strided_slice %224 {offsets = [0, 96], sizes = [8, 32], strides = [1, 1]} : vector<8x128xf32> to vector<8x32xf32>
    %233 = arith.mulf %226, %170 : vector<8x32xf32>
    %234 = arith.mulf %225, %231 : vector<8x32xf32>
    %235 = arith.addf %233, %234 : vector<8x32xf32>
    %236 = math.tanh %235 : vector<8x32xf32>
    %237 = arith.mulf %232, %236 : vector<8x32xf32>
    %238 = tpu.concatenate %172, %197, %217, %237 in 0 : vector<8x32xf32>, vector<8x32xf32>, vector<8x32xf32>, vector<8x32xf32> -> vector<32x32xf32>
    %cst_57 = arith.constant dense<0.000000e+00> : vector<32x1xf32>
    %239 = tpu.matmul %238, %2, %cst_57 {dimension_numbers = #tpu.dot_dimension_numbers<[1], [0], [0], [1], [0, 0, 1, 1], [], []>} : vector<32x32xf32>, vector<32x1xf32>, vector<32x1xf32> -> vector<32x1xf32>
    %c0_58 = arith.constant 0 : index
    %c0_59 = arith.constant 0 : index
    %240 = vector.load %arg7[%c0_58, %c0_59] : memref<1x1xf32, #tpu.memory_space<vmem>>, vector<1x1xf32>
    %241 = vector.shape_cast %240 : vector<1x1xf32> to vector<1x1xf32>
    %242 = vector.broadcast %241 : vector<1x1xf32> to vector<32x1xf32>
    %243 = arith.addf %239, %242 : vector<32x1xf32>
    %244 = vector.extract_strided_slice %243 {offsets = [0, 0], sizes = [8, 1], strides = [1, 1]} : vector<32x1xf32> to vector<8x1xf32>
    %245 = vector.extract_strided_slice %243 {offsets = [8, 0], sizes = [8, 1], strides = [1, 1]} : vector<32x1xf32> to vector<8x1xf32>
    %246 = vector.extract_strided_slice %243 {offsets = [16, 0], sizes = [8, 1], strides = [1, 1]} : vector<32x1xf32> to vector<8x1xf32>
    %247 = vector.extract_strided_slice %243 {offsets = [24, 0], sizes = [8, 1], strides = [1, 1]} : vector<32x1xf32> to vector<8x1xf32>
    %248 = tpu.concatenate %244, %245, %246, %247 in 1 : vector<8x1xf32>, vector<8x1xf32>, vector<8x1xf32>, vector<8x1xf32> -> vector<8x4xf32>
    %c0_60 = arith.constant 0 : index
    %c0_61 = arith.constant 0 : index
    %249 = vector.load %arg8[%c0_60, %c0_61] : memref<8x4xf32, #tpu.memory_space<vmem>>, vector<8x4xf32>
    tpu.vector_store %arg8[%c0_60, %c0_61], %248 {strides = array<i32>} : memref<8x4xf32, #tpu.memory_space<vmem>>, vector<8x4xf32>,
    return
  }
}

</mosaic_0001>

<llo_original>
// kernel: tpu_custom_call.1
$region0: #{tpu_custom_call.1}
  #allocation0 [shape = 'u32[]', space=smem, size = 0x4, offset = 0x4, fixed_abs, tag = 'smem constant byte address 0x4 - core index']
  #allocation1 [shape = 'u32[144,128]{1,0:T(1,128)}', space=vmem, size = 0x12000, scoped, tag = 'internal scratch']
  #allocation2 [shape = 'f32[1,1]{1,0:T(1,128)S(1)}', space=vmem, size = 0x200, scoped, tag = 'scoped memory for tpu_custom_call.1']
  %s0 = inlined_call_operand.vmem [shape: f32[64,1], index: 0, kind: input, shape index: {}]
  %s1 = inlined_call_operand.vmem [shape: f32[1,128], index: 1, kind: input, shape index: {}]
  %s2 = inlined_call_operand.vmem [shape: f32[32,128], index: 2, kind: input, shape index: {}]
  %s3 = inlined_call_operand.vmem [shape: f32[1,128], index: 3, kind: input, shape index: {}]
  %s4 = inlined_call_operand.vmem [shape: f32[32,128], index: 4, kind: input, shape index: {}]
  %s5 = inlined_call_operand.vmem [shape: f32[1,128], index: 5, kind: input, shape index: {}]
  %s6 = inlined_call_operand.vmem [shape: f32[32,1], index: 6, kind: input, shape index: {}]
  %s7 = inlined_call_operand.<no memory space> [shape: f32[1,1], index: 7, kind: input, shape index: {}]
  %s8 = inlined_call_operand.vmem [shape: f32[8,4], index: 8, kind: output, shape index: {}]
  %s9 = sld [smem:[#allocation0]]
  $region42: #{tpu_custom_call.1} parent=0
    _
  %s11 = ssub.s32 1, %s9
  %s12 = scalar_select 0, %s11, %s9
  %v13 = vstv %s7
  %14 = vst [vmem:[#allocation2] sm:$0x1] %v13
  // Predicated region
  $region2: #{tpu_custom_call.1} parent=0 // pred_check
    _
  $region3: #{tpu_custom_call.1} parent=0 // pred_check_branch
    %16 = sbr.rel (0) target = $region5
  $region4: #{tpu_custom_call.1} parent=0 // pred_region
    _
  $region5: #{tpu_custom_call.1} parent=0 // pred_fallthru
    _
  // Predicated region
  $region6: #{tpu_custom_call.1} parent=0 // pred_check
    _
  $region7: #{tpu_custom_call.1} parent=0 // pred_check_branch
    %18 = sbr.rel (0) target = $region9
  $region8: #{tpu_custom_call.1} parent=0 // pred_region
    _
  $region9: #{tpu_custom_call.1} parent=0 // pred_fallthru
    _
  // Predicated region
  $region10: #{tpu_custom_call.1} parent=0 // pred_check
    _
  $region11: #{tpu_custom_call.1} parent=0 // pred_check_branch
    %20 = sbr.rel (0) target = $region13
  $region12: #{tpu_custom_call.1} parent=0 // pred_region
    _
  $region13: #{tpu_custom_call.1} parent=0 // pred_fallthru
    _
  // Predicated region
  $region14: #{tpu_custom_call.1} parent=0 // pred_check
    _
  $region15: #{tpu_custom_call.1} parent=0 // pred_check_branch
    %22 = sbr.rel (0) target = $region17
  $region16: #{tpu_custom_call.1} parent=0 // pred_region
    _
  $region17: #{tpu_custom_call.1} parent=0 // pred_fallthru
    _
  // Predicated region
  $region18: #{tpu_custom_call.1} parent=0 // pred_check
    _
  $region19: #{tpu_custom_call.1} parent=0 // pred_check_branch
    %24 = sbr.rel (0) target = $region21
  $region20: #{tpu_custom_call.1} parent=0 // pred_region
    _
  $region21: #{tpu_custom_call.1} parent=0 // pred_fallthru
    _
  // Predicated region
  $region22: #{tpu_custom_call.1} parent=0 // pred_check
    _
  $region23: #{tpu_custom_call.1} parent=0 // pred_check_branch
    %26 = sbr.rel (0) target = $region25
  $region24: #{tpu_custom_call.1} parent=0 // pred_region
    _
  $region25: #{tpu_custom_call.1} parent=0 // pred_fallthru
    _
  // Predicated region
  $region26: #{tpu_custom_call.1} parent=0 // pred_check
    _
  $region27: #{tpu_custom_call.1} parent=0 // pred_check_branch
    %28 = sbr.rel (0) target = $region29
  $region28: #{tpu_custom_call.1} parent=0 // pred_region
    _
  $region29: #{tpu_custom_call.1} parent=0 // pred_fallthru
    _
  // Predicated region
  $region30: #{tpu_custom_call.1} parent=0 // pred_check
    _
  $region31: #{tpu_custom_call.1} parent=0 // pred_check_branch
    %30 = sbr.rel (0) target = $region33
  $region32: #{tpu_custom_call.1} parent=0 // pred_region
    _
  $region33: #{tpu_custom_call.1} parent=0 // pred_fallthru
    _
  %v31 = vld [vmem:[%s2] sm:$0xff]
  %v32 = vld [vmem:[%s2 + $0x8] sm:$0xff]
  %v33 = vld [vmem:[%s2 + $0x10] sm:$0xff]
  %v34 = vld [vmem:[%s2 + $0x18] sm:$0xff]
  %v35 = vld [vmem:[%s4] sm:$0xff]
  %v36 = vld [vmem:[%s4 + $0x8] sm:$0xff]
  %v37 = vld [vmem:[%s4 + $0x10] sm:$0xff]
  %v38 = vld [vmem:[%s4 + $0x18] sm:$0xff]
  %v39 = vld [vmem:[%s6] sm:$0xff]
  %v40 = vld [vmem:[%s6 + $0x8] sm:$0xff]
  %v41 = vld [vmem:[%s6 + $0x10] sm:$0xff]
  %v42 = vld [vmem:[%s6 + $0x18] sm:$0xff]
  %v43 = vld [vmem:[%s0] sm:$0xff]
  %v44 = vld [vmem:[%s0 + $0x8] sm:$0xff]
  %v45 = vld [vmem:[%s0 + $0x10] sm:$0xff]
  %v46 = vld [vmem:[%s0 + $0x18] sm:$0xff]
  %v47 = vld [vmem:[%s0 + $0x20] sm:$0xff]
  %v48 = vld [vmem:[%s0 + $0x28] sm:$0xff]
  %v49 = vld [vmem:[%s0 + $0x30] sm:$0xff]
  %v50 = vld [vmem:[%s0 + $0x38] sm:$0xff]
  %v51 = vld [vmem:[%s1] sm:$0x1]
  %v52 = vld [vmem:[%s3] sm:$0x1]
  %v54 = vlaneseq
  %v55 = vshrl.u32 %v54, 7
  %v56 = vsub.s32 0, %v55
  %v57 = vrot.slane %v52, %v56
  %vm59 = vcmask 7168
  %v61 = vsel %vm59, %v43, 0
  %v64 = vsel %vm59, %v44, 0
  %v67 = vsel %vm59, %v45, 0
  %v70 = vsel %vm59, %v46, 0
  %v73 = vsel %vm59, %v47, 0
  %v76 = vsel %vm59, %v48, 0
  %v79 = vsel %vm59, %v49, 0
  %v82 = vsel %vm59, %v50, 0
  %vm84 = vcmask 1040384
  %v86 = vsel %vm84, %v51, 0
  %88 = vmatprep.subr.mxu0 0.0
  %89 = vmatpush1.msra.mxu0 0.0
  %90 = vmatprep.subr.mxu0 0.0
  %91 = vmatpush1.msra.mxu0 0.0
  %92 = vmatprep.subr.mxu0 0.0
  %93 = vmatpush1.msra.mxu0 0.0
  %94 = vmatprep.subr.mxu0 0.0
  %95 = vmatpush1.msra.mxu0 0.0
  %96 = vmatprep.subr.mxu0 0.0
  %97 = vmatpush1.msra.mxu0 0.0
  %98 = vmatprep.subr.mxu0 0.0
  %99 = vmatpush1.msra.mxu0 0.0
  %100 = vmatprep.subr.mxu0 0.0
  %101 = vmatpush1.msra.mxu0 0.0
  %102 = vmatprep.subr.mxu0 0.0
  %103 = vmatpush1.msra.mxu0 0.0
  %104 = vmatprep.subr.mxu0 0.0
  %105 = vmatpush1.msra.mxu0 0.0
  %106 = vmatprep.subr.mxu0 0.0
  %107 = vmatpush1.msra.mxu0 0.0
  %108 = vmatprep.subr.mxu0 0.0
  %109 = vmatpush1.msra.mxu0 0.0
  %110 = vmatprep.subr.mxu0 0.0
  %111 = vmatpush1.msra.mxu0 0.0
  %112 = vmatprep.subr.mxu0 0.0
  %113 = vmatpush1.msra.mxu0 0.0
  %114 = vmatprep.subr.mxu0 0.0
  %115 = vmatpush1.msra.mxu0 0.0
  %116 = vmatprep.subr.mxu0 0.0
  %117 = vmatpush1.msra.mxu0 0.0
  %118 = vmatprep.subr.mxu0 0.0
  %119 = vmatpush1.msra.mxu0 %v86
  %120 = vmatprep.subr.mxu0 0.0
  %121 = vmatpush2.msra.mxu0 0.0
  %122 = vmatprep.subr.mxu0 0.0
  %123 = vmatpush2.msra.mxu0 0.0
  %124 = vmatprep.subr.mxu0 0.0
  %125 = vmatpush2.msra.mxu0 0.0
  %126 = vmatprep.subr.mxu0 0.0
  %127 = vmatpush2.msra.mxu0 0.0
  %128 = vmatprep.subr.mxu0 0.0
  %129 = vmatpush2.msra.mxu0 0.0
  %130 = vmatprep.subr.mxu0 0.0
  %131 = vmatpush2.msra.mxu0 0.0
  %132 = vmatprep.subr.mxu0 0.0
  %133 = vmatpush2.msra.mxu0 0.0
  %134 = vmatprep.subr.mxu0 0.0
  %135 = vmatpush2.msra.mxu0 0.0
  %136 = vmatprep.subr.mxu0 0.0
  %137 = vmatpush2.msra.mxu0 0.0
  %138 = vmatprep.subr.mxu0 0.0
  %139 = vmatpush2.msra.mxu0 0.0
  %140 = vmatprep.subr.mxu0 0.0
  %141 = vmatpush2.msra.mxu0 0.0
  %142 = vmatprep.subr.mxu0 0.0
  %143 = vmatpush2.msra.mxu0 0.0
  %144 = vmatprep.subr.mxu0 0.0
  %145 = vmatpush2.msra.mxu0 0.0
  %146 = vmatprep.subr.mxu0 0.0
  %147 = vmatpush2.msra.mxu0 0.0
  %148 = vmatprep.subr.mxu0 0.0
  %149 = vmatpush2.msra.mxu0 0.0
  %150 = vmatprep.subr.mxu0 0.0
  %151 = vmatpush2.msra.mxu0 0.0
  %152 = vmatprep.mubr.f32.mxu0 0.0
  %153 = vmatmul.mubr.f32.gmra.mxu0 %v61
  %v154 = vpop.f32.mrf.mxu0
  %v155 = vadd.f32 %v57, %v154
  %v156 = vpop.f32.mrf.mxu0
  %157 = vmatprep.mubr.f32.mxu0 0.0
  %158 = vmatmul.mubr.f32.gmra.mxu0 %v64
  %v159 = vpop.f32.mrf.mxu0
  %v160 = vadd.f32 %v57, %v159
  %v161 = vpop.f32.mrf.mxu0
  %162 = vmatprep.mubr.f32.mxu0 0.0
  %163 = vmatmul.mubr.f32.gmra.mxu0 %v67
  %v164 = vpop.f32.mrf.mxu0
  %v165 = vadd.f32 %v57, %v164
  %v166 = vpop.f32.mrf.mxu0
  %167 = vmatprep.mubr.f32.mxu0 0.0
  %168 = vmatmul.mubr.f32.gmra.mxu0 %v70
  %v169 = vpop.f32.mrf.mxu0
  %v170 = vadd.f32 %v57, %v169
  %v171 = vpop.f32.mrf.mxu0
  %172 = vmatprep.mubr.f32.mxu0 0.0
  %173 = vmatmul.mubr.f32.gmra.mxu0 %v73
  %v174 = vpop.f32.mrf.mxu0
  %v175 = vadd.f32 %v57, %v174
  %v176 = vpop.f32.mrf.mxu0
  %177 = vmatprep.mubr.f32.mxu0 0.0
  %178 = vmatmul.mubr.f32.gmra.mxu0 %v76
  %v179 = vpop.f32.mrf.mxu0
  %v180 = vadd.f32 %v57, %v179
  %v181 = vpop.f32.mrf.mxu0
  %182 = vmatprep.mubr.f32.mxu0 0.0
  %183 = vmatmul.mubr.f32.gmra.mxu0 %v79
  %v184 = vpop.f32.mrf.mxu0
  %v185 = vadd.f32 %v57, %v184
  %v186 = vpop.f32.mrf.mxu0
  %187 = vmatprep.mubr.f32.mxu0 0.0
  %188 = vmatmul.mubr.f32.gmra.mxu0 %v82
  %v189 = vpop.f32.mrf.mxu0
  %v190 = vadd.f32 %v57, %v189
  %v191 = vpop.f32.mrf.mxu0
  %192 = vdwg.mxu0
  %v193 = vxor.u32 %v155, 2147483648
  %v194 = vmul.f32 %v193, 1.442695
  %v195 = vpow.pop %v194
  %v196 = vadd.f32 %v195, 1.0
  %v197 = vrcp.pop %v196
  %v198 = vmul.f32 1.0, %v197
  %v199 = vmul.f32 %v198, 2.0
  %v200 = vsub.f32 %v199, 1.0
  %202 = vrot.lane.b32.xlu0 %v200, 64
  %v203 = vpop.permute.xlu0 %202
  %v205 = vmul.f32 %v198, %v203
  %v206 = vtanh.pop %v205
  %208 = vrot.lane.b32.xlu0 %v206, 96
  %v209 = vpop.permute.xlu0 %208
  %v211 = vmul.f32 %v198, %v209
  %213 = vrot.lane.b32.xlu0 %v211, 32
  %v214 = vpop.permute.xlu0 %213
  %vm215 = vcmask 261120
  %v216 = vsel %vm215, %v214, 0
  %218 = vmatprep.subr.mxu0 0.0
  %219 = vmatpush1.msra.mxu0 0.0
  %220 = vmatprep.subr.mxu0 0.0
  %221 = vmatpush1.msra.mxu0 0.0
  %222 = vmatprep.subr.mxu0 0.0
  %223 = vmatpush1.msra.mxu0 0.0
  %224 = vmatprep.subr.mxu0 0.0
  %225 = vmatpush1.msra.mxu0 0.0
  %226 = vmatprep.subr.mxu0 0.0
  %227 = vmatpush1.msra.mxu0 0.0
  %228 = vmatprep.subr.mxu0 0.0
  %229 = vmatpush1.msra.mxu0 0.0
  %230 = vmatprep.subr.mxu0 0.0
  %231 = vmatpush1.msra.mxu0 0.0
  %232 = vmatprep.subr.mxu0 0.0
  %233 = vmatpush1.msra.mxu0 0.0
  %234 = vmatprep.subr.mxu0 0.0
  %235 = vmatpush1.msra.mxu0 0.0
  %236 = vmatprep.subr.mxu0 0.0
  %237 = vmatpush1.msra.mxu0 0.0
  %238 = vmatprep.subr.mxu0 0.0
  %239 = vmatpush1.msra.mxu0 0.0
  %240 = vmatprep.subr.mxu0 0.0
  %241 = vmatpush1.msra.mxu0 0.0
  %242 = vmatprep.subr.mxu0 0.0
  %243 = vmatpush1.msra.mxu0 %v34
  %244 = vmatprep.subr.mxu0 0.0
  %245 = vmatpush1.msra.mxu0 %v33
  %246 = vmatprep.subr.mxu0 0.0
  %247 = vmatpush1.msra.mxu0 %v32
  %248 = vmatprep.subr.mxu0 0.0
  %249 = vmatpush1.msra.mxu0 %v31
  %250 = vmatprep.subr.mxu0 0.0
  %251 = vmatpush2.msra.mxu0 0.0
  %252 = vmatprep.subr.mxu0 0.0
  %253 = vmatpush2.msra.mxu0 0.0
  %254 = vmatprep.subr.mxu0 0.0
  %255 = vmatpush2.msra.mxu0 0.0
  %256 = vmatprep.subr.mxu0 0.0
  %257 = vmatpush2.msra.mxu0 0.0
  %258 = vmatprep.subr.mxu0 0.0
  %259 = vmatpush2.msra.mxu0 0.0
  %260 = vmatprep.subr.mxu0 0.0
  %261 = vmatpush2.msra.mxu0 0.0
  %262 = vmatprep.subr.mxu0 0.0
  %263 = vmatpush2.msra.mxu0 0.0
  %264 = vmatprep.subr.mxu0 0.0
  %265 = vmatpush2.msra.mxu0 0.0
  %266 = vmatprep.subr.mxu0 0.0
  %267 = vmatpush2.msra.mxu0 0.0
  %268 = vmatprep.subr.mxu0 0.0
  %269 = vmatpush2.msra.mxu0 0.0
  %270 = vmatprep.subr.mxu0 0.0
  %271 = vmatpush2.msra.mxu0 0.0
  %272 = vmatprep.subr.mxu0 0.0
  %273 = vmatpush2.msra.mxu0 0.0
  %274 = vmatprep.subr.mxu0 0.0
  %275 = vmatpush2.msra.mxu0 0.0
  %276 = vmatprep.subr.mxu0 0.0
  %277 = vmatpush2.msra.mxu0 0.0
  %278 = vmatprep.subr.mxu0 0.0
  %279 = vmatpush2.msra.mxu0 0.0
  %280 = vmatprep.subr.mxu0 0.0
  %281 = vmatpush2.msra.mxu0 0.0
  %282 = vmatprep.mubr.f32.mxu0 0.0
  %283 = vmatmul.mubr.f32.gmra.mxu0 %v216
  %v284 = vpop.f32.mrf.mxu0
  %v285 = vadd.f32 0.0, %v284
  %v286 = vpop.f32.mrf.mxu0
  %287 = vdwg.mxu0
  %v288 = vadd.f32 %v160, %v285
  %v289 = vxor.u32 %v288, 2147483648
  %v290 = vmul.f32 %v289, 1.442695
  %v291 = vpow.pop %v290
  %v292 = vadd.f32 %v291, 1.0
  %v293 = vrcp.pop %v292
  %v294 = vmul.f32 1.0, %v293
  %v295 = vmul.f32 %v294, 2.0
  %v296 = vsub.f32 %v295, 1.0
  %298 = vrot.lane.b32.xlu0 %v205, 32
  %v299 = vpop.permute.xlu0 %298
  %v301 = vmul.f32 %v294, %v299
  %303 = vrot.lane.b32.xlu0 %v296, 64
  %v304 = vpop.permute.xlu0 %303
  %v306 = vmul.f32 %v294, %v304
  %308 = vrot.lane.b32.xlu0 %v306, 32
  %v309 = vpop.permute.xlu0 %308
  %v311 = vadd.f32 %v301, %v309
  %v312 = vtanh.pop %v311
  %314 = vrot.lane.b32.xlu0 %v312, 64
  %v315 = vpop.permute.xlu0 %314
  %v317 = vmul.f32 %v294, %v315
  %319 = vrot.lane.b32.xlu0 %v317, 32
  %v320 = vpop.permute.xlu0 %319
  %v321 = vsel %vm215, %v320, 0
  %323 = vmatprep.subr.mxu0 0.0
  %324 = vmatpush1.msra.mxu0 0.0
  %325 = vmatprep.subr.mxu0 0.0
  %326 = vmatpush1.msra.mxu0 0.0
  %327 = vmatprep.subr.mxu0 0.0
  %328 = vmatpush1.msra.mxu0 0.0
  %329 = vmatprep.subr.mxu0 0.0
  %330 = vmatpush1.msra.mxu0 0.0
  %331 = vmatprep.subr.mxu0 0.0
  %332 = vmatpush1.msra.mxu0 0.0
  %333 = vmatprep.subr.mxu0 0.0
  %334 = vmatpush1.msra.mxu0 0.0
  %335 = vmatprep.subr.mxu0 0.0
  %336 = vmatpush1.msra.mxu0 0.0
  %337 = vmatprep.subr.mxu0 0.0
  %338 = vmatpush1.msra.mxu0 0.0
  %339 = vmatprep.subr.mxu0 0.0
  %340 = vmatpush1.msra.mxu0 0.0
  %341 = vmatprep.subr.mxu0 0.0
  %342 = vmatpush1.msra.mxu0 0.0
  %343 = vmatprep.subr.mxu0 0.0
  %344 = vmatpush1.msra.mxu0 0.0
  %345 = vmatprep.subr.mxu0 0.0
  %346 = vmatpush1.msra.mxu0 0.0
  %347 = vmatprep.subr.mxu0 0.0
  %348 = vmatpush1.msra.mxu0 %v34
  %349 = vmatprep.subr.mxu0 0.0
  %350 = vmatpush1.msra.mxu0 %v33
  %351 = vmatprep.subr.mxu0 0.0
  %352 = vmatpush1.msra.mxu0 %v32
  %353 = vmatprep.subr.mxu0 0.0
  %354 = vmatpush1.msra.mxu0 %v31
  %355 = vmatprep.subr.mxu0 0.0
  %356 = vmatpush2.msra.mxu0 0.0
  %357 = vmatprep.subr.mxu0 0.0
  %358 = vmatpush2.msra.mxu0 0.0
  %359 = vmatprep.subr.mxu0 0.0
  %360 = vmatpush2.msra.mxu0 0.0
  %361 = vmatprep.subr.mxu0 0.0
  %362 = vmatpush2.msra.mxu0 0.0
  %363 = vmatprep.subr.mxu0 0.0
  %364 = vmatpush2.msra.mxu0 0.0
  %365 = vmatprep.subr.mxu0 0.0
  %366 = vmatpush2.msra.mxu0 0.0
  %367 = vmatprep.subr.mxu0 0.0
  %368 = vmatpush2.msra.mxu0 0.0
  %369 = vmatprep.subr.mxu0 0.0
  %370 = vmatpush2.msra.mxu0 0.0
  %371 = vmatprep.subr.mxu0 0.0
  %372 = vmatpush2.msra.mxu0 0.0
  %373 = vmatprep.subr.mxu0 0.0
  %374 = vmatpush2.msra.mxu0 0.0
  %375 = vmatprep.subr.mxu0 0.0
  %376 = vmatpush2.msra.mxu0 0.0
  %377 = vmatprep.subr.mxu0 0.0
  %378 = vmatpush2.msra.mxu0 0.0
  %379 = vmatprep.subr.mxu0 0.0
  %380 = vmatpush2.msra.mxu0 0.0
  %381 = vmatprep.subr.mxu0 0.0
  %382 = vmatpush2.msra.mxu0 0.0
  %383 = vmatprep.subr.mxu0 0.0
  %384 = vmatpush2.msra.mxu0 0.0
  %385 = vmatprep.subr.mxu0 0.0
  %386 = vmatpush2.msra.mxu0 0.0
  %387 = vmatprep.mubr.f32.mxu0 0.0
  %388 = vmatmul.mubr.f32.gmra.mxu0 %v321
  %v389 = vpop.f32.mrf.mxu0
  %v390 = vadd.f32 0.0, %v389
  %v391 = vpop.f32.mrf.mxu0
  %392 = vdwg.mxu0
  %v393 = vadd.f32 %v165, %v390
  %v394 = vxor.u32 %v393, 2147483648
  %v395 = vmul.f32 %v394, 1.442695
  %v396 = vpow.pop %v395
  %v397 = vadd.f32 %v396, 1.0
  %v398 = vrcp.pop %v397
  %v399 = vmul.f32 1.0, %v398
  %v400 = vmul.f32 %v399, 2.0
  %v401 = vsub.f32 %v400, 1.0
  %v402 = vmul.f32 %v399, %v311
  %404 = vrot.lane.b32.xlu0 %v401, 64
  %v405 = vpop.permute.xlu0 %404
  %v407 = vmul.f32 %v399, %v405
  %409 = vrot.lane.b32.xlu0 %v407, 32
  %v410 = vpop.permute.xlu0 %409
  %v412 = vadd.f32 %v402, %v410
  %v413 = vtanh.pop %v412
  %415 = vrot.lane.b32.xlu0 %v413, 64
  %v416 = vpop.permute.xlu0 %415
  %v418 = vmul.f32 %v399, %v416
  %420 = vrot.lane.b32.xlu0 %v418, 32
  %v421 = vpop.permute.xlu0 %420
  %v422 = vsel %vm215, %v421, 0
  %424 = vmatprep.subr.mxu0 0.0
  %425 = vmatpush1.msra.mxu0 0.0
  %426 = vmatprep.subr.mxu0 0.0
  %427 = vmatpush1.msra.mxu0 0.0
  %428 = vmatprep.subr.mxu0 0.0
  %429 = vmatpush1.msra.mxu0 0.0
  %430 = vmatprep.subr.mxu0 0.0
  %431 = vmatpush1.msra.mxu0 0.0
  %432 = vmatprep.subr.mxu0 0.0
  %433 = vmatpush1.msra.mxu0 0.0
  %434 = vmatprep.subr.mxu0 0.0
  %435 = vmatpush1.msra.mxu0 0.0
  %436 = vmatprep.subr.mxu0 0.0
  %437 = vmatpush1.msra.mxu0 0.0
  %438 = vmatprep.subr.mxu0 0.0
  %439 = vmatpush1.msra.mxu0 0.0
  %440 = vmatprep.subr.mxu0 0.0
  %441 = vmatpush1.msra.mxu0 0.0
  %442 = vmatprep.subr.mxu0 0.0
  %443 = vmatpush1.msra.mxu0 0.0
  %444 = vmatprep.subr.mxu0 0.0
  %445 = vmatpush1.msra.mxu0 0.0
  %446 = vmatprep.subr.mxu0 0.0
  %447 = vmatpush1.msra.mxu0 0.0
  %448 = vmatprep.subr.mxu0 0.0
  %449 = vmatpush1.msra.mxu0 %v34
  %450 = vmatprep.subr.mxu0 0.0
  %451 = vmatpush1.msra.mxu0 %v33
  %452 = vmatprep.subr.mxu0 0.0
  %453 = vmatpush1.msra.mxu0 %v32
  %454 = vmatprep.subr.mxu0 0.0
  %455 = vmatpush1.msra.mxu0 %v31
  %456 = vmatprep.subr.mxu0 0.0
  %457 = vmatpush2.msra.mxu0 0.0
  %458 = vmatprep.subr.mxu0 0.0
  %459 = vmatpush2.msra.mxu0 0.0
  %460 = vmatprep.subr.mxu0 0.0
  %461 = vmatpush2.msra.mxu0 0.0
  %462 = vmatprep.subr.mxu0 0.0
  %463 = vmatpush2.msra.mxu0 0.0
  %464 = vmatprep.subr.mxu0 0.0
  %465 = vmatpush2.msra.mxu0 0.0
  %466 = vmatprep.subr.mxu0 0.0
  %467 = vmatpush2.msra.mxu0 0.0
  %468 = vmatprep.subr.mxu0 0.0
  %469 = vmatpush2.msra.mxu0 0.0
  %470 = vmatprep.subr.mxu0 0.0
  %471 = vmatpush2.msra.mxu0 0.0
  %472 = vmatprep.subr.mxu0 0.0
  %473 = vmatpush2.msra.mxu0 0.0
  %474 = vmatprep.subr.mxu0 0.0
  %475 = vmatpush2.msra.mxu0 0.0
  %476 = vmatprep.subr.mxu0 0.0
  %477 = vmatpush2.msra.mxu0 0.0
  %478 = vmatprep.subr.mxu0 0.0
  %479 = vmatpush2.msra.mxu0 0.0
  %480 = vmatprep.subr.mxu0 0.0
  %481 = vmatpush2.msra.mxu0 0.0
  %482 = vmatprep.subr.mxu0 0.0
  %483 = vmatpush2.msra.mxu0 0.0
  %484 = vmatprep.subr.mxu0 0.0
  %485 = vmatpush2.msra.mxu0 0.0
  %486 = vmatprep.subr.mxu0 0.0
  %487 = vmatpush2.msra.mxu0 0.0
  %488 = vmatprep.mubr.f32.mxu0 0.0
  %489 = vmatmul.mubr.f32.gmra.mxu0 %v422
  %v490 = vpop.f32.mrf.mxu0
  %v491 = vadd.f32 0.0, %v490
  %v492 = vpop.f32.mrf.mxu0
  %493 = vdwg.mxu0
  %v494 = vadd.f32 %v170, %v491
  %v495 = vxor.u32 %v494, 2147483648
  %v496 = vmul.f32 %v495, 1.442695
  %v497 = vpow.pop %v496
  %v498 = vadd.f32 %v497, 1.0
  %v499 = vrcp.pop %v498
  %v500 = vmul.f32 1.0, %v499
  %v501 = vmul.f32 %v500, 2.0
  %v502 = vsub.f32 %v501, 1.0
  %v503 = vmul.f32 %v500, %v412
  %505 = vrot.lane.b32.xlu0 %v502, 64
  %v506 = vpop.permute.xlu0 %505
  %v508 = vmul.f32 %v500, %v506
  %510 = vrot.lane.b32.xlu0 %v508, 32
  %v511 = vpop.permute.xlu0 %510
  %v513 = vadd.f32 %v503, %v511
  %v514 = vtanh.pop %v513
  %516 = vrot.lane.b32.xlu0 %v514, 64
  %v517 = vpop.permute.xlu0 %516
  %v519 = vmul.f32 %v500, %v517
  %521 = vrot.lane.b32.xlu0 %v519, 32
  %v522 = vpop.permute.xlu0 %521
  %v523 = vsel %vm215, %v522, 0
  %525 = vmatprep.subr.mxu0 0.0
  %526 = vmatpush1.msra.mxu0 0.0
  %527 = vmatprep.subr.mxu0 0.0
  %528 = vmatpush1.msra.mxu0 0.0
  %529 = vmatprep.subr.mxu0 0.0
  %530 = vmatpush1.msra.mxu0 0.0
  %531 = vmatprep.subr.mxu0 0.0
  %532 = vmatpush1.msra.mxu0 0.0
  %533 = vmatprep.subr.mxu0 0.0
  %534 = vmatpush1.msra.mxu0 0.0
  %535 = vmatprep.subr.mxu0 0.0
  %536 = vmatpush1.msra.mxu0 0.0
  %537 = vmatprep.subr.mxu0 0.0
  %538 = vmatpush1.msra.mxu0 0.0
  %539 = vmatprep.subr.mxu0 0.0
  %540 = vmatpush1.msra.mxu0 0.0
  %541 = vmatprep.subr.mxu0 0.0
  %542 = vmatpush1.msra.mxu0 0.0
  %543 = vmatprep.subr.mxu0 0.0
  %544 = vmatpush1.msra.mxu0 0.0
  %545 = vmatprep.subr.mxu0 0.0
  %546 = vmatpush1.msra.mxu0 0.0
  %547 = vmatprep.subr.mxu0 0.0
  %548 = vmatpush1.msra.mxu0 0.0
  %549 = vmatprep.subr.mxu0 0.0
  %550 = vmatpush1.msra.mxu0 %v34
  %551 = vmatprep.subr.mxu0 0.0
  %552 = vmatpush1.msra.mxu0 %v33
  %553 = vmatprep.subr.mxu0 0.0
  %554 = vmatpush1.msra.mxu0 %v32
  %555 = vmatprep.subr.mxu0 0.0
  %556 = vmatpush1.msra.mxu0 %v31
  %557 = vmatprep.subr.mxu0 0.0
  %558 = vmatpush2.msra.mxu0 0.0
  %559 = vmatprep.subr.mxu0 0.0
  %560 = vmatpush2.msra.mxu0 0.0
  %561 = vmatprep.subr.mxu0 0.0
  %562 = vmatpush2.msra.mxu0 0.0
  %563 = vmatprep.subr.mxu0 0.0
  %564 = vmatpush2.msra.mxu0 0.0
  %565 = vmatprep.subr.mxu0 0.0
  %566 = vmatpush2.msra.mxu0 0.0
  %567 = vmatprep.subr.mxu0 0.0
  %568 = vmatpush2.msra.mxu0 0.0
  %569 = vmatprep.subr.mxu0 0.0
  %570 = vmatpush2.msra.mxu0 0.0
  %571 = vmatprep.subr.mxu0 0.0
  %572 = vmatpush2.msra.mxu0 0.0
  %573 = vmatprep.subr.mxu0 0.0
  %574 = vmatpush2.msra.mxu0 0.0
  %575 = vmatprep.subr.mxu0 0.0
  %576 = vmatpush2.msra.mxu0 0.0
  %577 = vmatprep.subr.mxu0 0.0
  %578 = vmatpush2.msra.mxu0 0.0
  %579 = vmatprep.subr.mxu0 0.0
  %580 = vmatpush2.msra.mxu0 0.0
  %581 = vmatprep.subr.mxu0 0.0
  %582 = vmatpush2.msra.mxu0 0.0
  %583 = vmatprep.subr.mxu0 0.0
  %584 = vmatpush2.msra.mxu0 0.0
  %585 = vmatprep.subr.mxu0 0.0
  %586 = vmatpush2.msra.mxu0 0.0
  %587 = vmatprep.subr.mxu0 0.0
  %588 = vmatpush2.msra.mxu0 0.0
  %589 = vmatprep.mubr.f32.mxu0 0.0
  %590 = vmatmul.mubr.f32.gmra.mxu0 %v523
  %v591 = vpop.f32.mrf.mxu0
  %v592 = vadd.f32 0.0, %v591
  %v593 = vpop.f32.mrf.mxu0
  %594 = vdwg.mxu0
  %v595 = vadd.f32 %v175, %v592
  %v596 = vxor.u32 %v595, 2147483648
  %v597 = vmul.f32 %v596, 1.442695
  %v598 = vpow.pop %v597
  %v599 = vadd.f32 %v598, 1.0
  %v600 = vrcp.pop %v599
  %v601 = vmul.f32 1.0, %v600
  %v602 = vmul.f32 %v601, 2.0
  %v603 = vsub.f32 %v602, 1.0
  %v604 = vmul.f32 %v601, %v513
  %606 = vrot.lane.b32.xlu0 %v603, 64
  %v607 = vpop.permute.xlu0 %606
  %v609 = vmul.f32 %v601, %v607
  %611 = vrot.lane.b32.xlu0 %v609, 32
  %v612 = vpop.permute.xlu0 %611
  %v614 = vadd.f32 %v604, %v612
  %v615 = vtanh.pop %v614
  %617 = vrot.lane.b32.xlu0 %v615, 64
  %v618 = vpop.permute.xlu0 %617
  %v620 = vmul.f32 %v601, %v618
  %622 = vrot.lane.b32.xlu0 %v620, 32
  %v623 = vpop.permute.xlu0 %622
  %v624 = vsel %vm215, %v623, 0
  %626 = vmatprep.subr.mxu0 0.0
  %627 = vmatpush1.msra.mxu0 0.0
  %628 = vmatprep.subr.mxu0 0.0
  %629 = vmatpush1.msra.mxu0 0.0
  %630 = vmatprep.subr.mxu0 0.0
  %631 = vmatpush1.msra.mxu0 0.0
  %632 = vmatprep.subr.mxu0 0.0
  %633 = vmatpush1.msra.mxu0 0.0
  %634 = vmatprep.subr.mxu0 0.0
  %635 = vmatpush1.msra.mxu0 0.0
  %636 = vmatprep.subr.mxu0 0.0
  %637 = vmatpush1.msra.mxu0 0.0
  %638 = vmatprep.subr.mxu0 0.0
  %639 = vmatpush1.msra.mxu0 0.0
  %640 = vmatprep.subr.mxu0 0.0
  %641 = vmatpush1.msra.mxu0 0.0
  %642 = vmatprep.subr.mxu0 0.0
  %643 = vmatpush1.msra.mxu0 0.0
  %644 = vmatprep.subr.mxu0 0.0
  %645 = vmatpush1.msra.mxu0 0.0
  %646 = vmatprep.subr.mxu0 0.0
  %647 = vmatpush1.msra.mxu0 0.0
  %648 = vmatprep.subr.mxu0 0.0
  %649 = vmatpush1.msra.mxu0 0.0
  %650 = vmatprep.subr.mxu0 0.0
  %651 = vmatpush1.msra.mxu0 %v34
  %652 = vmatprep.subr.mxu0 0.0
  %653 = vmatpush1.msra.mxu0 %v33
  %654 = vmatprep.subr.mxu0 0.0
  %655 = vmatpush1.msra.mxu0 %v32
  %656 = vmatprep.subr.mxu0 0.0
  %657 = vmatpush1.msra.mxu0 %v31
  %658 = vmatprep.subr.mxu0 0.0
  %659 = vmatpush2.msra.mxu0 0.0
  %660 = vmatprep.subr.mxu0 0.0
  %661 = vmatpush2.msra.mxu0 0.0
  %662 = vmatprep.subr.mxu0 0.0
  %663 = vmatpush2.msra.mxu0 0.0
  %664 = vmatprep.subr.mxu0 0.0
  %665 = vmatpush2.msra.mxu0 0.0
  %666 = vmatprep.subr.mxu0 0.0
  %667 = vmatpush2.msra.mxu0 0.0
  %668 = vmatprep.subr.mxu0 0.0
  %669 = vmatpush2.msra.mxu0 0.0
  %670 = vmatprep.subr.mxu0 0.0
  %671 = vmatpush2.msra.mxu0 0.0
  %672 = vmatprep.subr.mxu0 0.0
  %673 = vmatpush2.msra.mxu0 0.0
  %674 = vmatprep.subr.mxu0 0.0
  %675 = vmatpush2.msra.mxu0 0.0
  %676 = vmatprep.subr.mxu0 0.0
  %677 = vmatpush2.msra.mxu0 0.0
  %678 = vmatprep.subr.mxu0 0.0
  %679 = vmatpush2.msra.mxu0 0.0
  %680 = vmatprep.subr.mxu0 0.0
  %681 = vmatpush2.msra.mxu0 0.0
  %682 = vmatprep.subr.mxu0 0.0
  %683 = vmatpush2.msra.mxu0 0.0
  %684 = vmatprep.subr.mxu0 0.0
  %685 = vmatpush2.msra.mxu0 0.0
  %686 = vmatprep.subr.mxu0 0.0
  %687 = vmatpush2.msra.mxu0 0.0
  %688 = vmatprep.subr.mxu0 0.0
  %689 = vmatpush2.msra.mxu0 0.0
  %690 = vmatprep.mubr.f32.mxu0 0.0
  %691 = vmatmul.mubr.f32.gmra.mxu0 %v624
  %v692 = vpop.f32.mrf.mxu0
  %v693 = vadd.f32 0.0, %v692
  %v694 = vpop.f32.mrf.mxu0
  %695 = vdwg.mxu0
  %v696 = vadd.f32 %v180, %v693
  %v697 = vxor.u32 %v696, 2147483648
  %v698 = vmul.f32 %v697, 1.442695
  %v699 = vpow.pop %v698
  %v700 = vadd.f32 %v699, 1.0
  %v701 = vrcp.pop %v700
  %v702 = vmul.f32 1.0, %v701
  %v703 = vmul.f32 %v702, 2.0
  %v704 = vsub.f32 %v703, 1.0
  %v705 = vmul.f32 %v702, %v614
  %707 = vrot.lane.b32.xlu0 %v704, 64
  %v708 = vpop.permute.xlu0 %707
  %v710 = vmul.f32 %v702, %v708
  %712 = vrot.lane.b32.xlu0 %v710, 32
  %v713 = vpop.permute.xlu0 %712
  %v715 = vadd.f32 %v705, %v713
  %v716 = vtanh.pop %v715
  %718 = vrot.lane.b32.xlu0 %v716, 64
  %v719 = vpop.permute.xlu0 %718
  %v721 = vmul.f32 %v702, %v719
  %723 = vrot.lane.b32.xlu0 %v721, 32
  %v724 = vpop.permute.xlu0 %723
  %v725 = vsel %vm215, %v724, 0
  %727 = vmatprep.subr.mxu0 0.0
  %728 = vmatpush1.msra.mxu0 0.0
  %729 = vmatprep.subr.mxu0 0.0
  %730 = vmatpush1.msra.mxu0 0.0
  %731 = vmatprep.subr.mxu0 0.0
  %732 = vmatpush1.msra.mxu0 0.0
  %733 = vmatprep.subr.mxu0 0.0
  %734 = vmatpush1.msra.mxu0 0.0
  %735 = vmatprep.subr.mxu0 0.0
  %736 = vmatpush1.msra.mxu0 0.0
  %737 = vmatprep.subr.mxu0 0.0
  %738 = vmatpush1.msra.mxu0 0.0
  %739 = vmatprep.subr.mxu0 0.0
  %740 = vmatpush1.msra.mxu0 0.0
  %741 = vmatprep.subr.mxu0 0.0
  %742 = vmatpush1.msra.mxu0 0.0
  %743 = vmatprep.subr.mxu0 0.0
  %744 = vmatpush1.msra.mxu0 0.0
  %745 = vmatprep.subr.mxu0 0.0
  %746 = vmatpush1.msra.mxu0 0.0
  %747 = vmatprep.subr.mxu0 0.0
  %748 = vmatpush1.msra.mxu0 0.0
  %749 = vmatprep.subr.mxu0 0.0
  %750 = vmatpush1.msra.mxu0 0.0
  %751 = vmatprep.subr.mxu0 0.0
  %752 = vmatpush1.msra.mxu0 %v34
  %753 = vmatprep.subr.mxu0 0.0
  %754 = vmatpush1.msra.mxu0 %v33
  %755 = vmatprep.subr.mxu0 0.0
  %756 = vmatpush1.msra.mxu0 %v32
  %757 = vmatprep.subr.mxu0 0.0
  %758 = vmatpush1.msra.mxu0 %v31
  %759 = vmatprep.subr.mxu0 0.0
  %760 = vmatpush2.msra.mxu0 0.0
  %761 = vmatprep.subr.mxu0 0.0
  %762 = vmatpush2.msra.mxu0 0.0
  %763 = vmatprep.subr.mxu0 0.0
  %764 = vmatpush2.msra.mxu0 0.0
  %765 = vmatprep.subr.mxu0 0.0
  %766 = vmatpush2.msra.mxu0 0.0
  %767 = vmatprep.subr.mxu0 0.0
  %768 = vmatpush2.msra.mxu0 0.0
  %769 = vmatprep.subr.mxu0 0.0
  %770 = vmatpush2.msra.mxu0 0.0
  %771 = vmatprep.subr.mxu0 0.0
  %772 = vmatpush2.msra.mxu0 0.0
  %773 = vmatprep.subr.mxu0 0.0
  %774 = vmatpush2.msra.mxu0 0.0
  %775 = vmatprep.subr.mxu0 0.0
  %776 = vmatpush2.msra.mxu0 0.0
  %777 = vmatprep.subr.mxu0 0.0
  %778 = vmatpush2.msra.mxu0 0.0
  %779 = vmatprep.subr.mxu0 0.0
  %780 = vmatpush2.msra.mxu0 0.0
  %781 = vmatprep.subr.mxu0 0.0
  %782 = vmatpush2.msra.mxu0 0.0
  %783 = vmatprep.subr.mxu0 0.0
  %784 = vmatpush2.msra.mxu0 0.0
  %785 = vmatprep.subr.mxu0 0.0
  %786 = vmatpush2.msra.mxu0 0.0
  %787 = vmatprep.subr.mxu0 0.0
  %788 = vmatpush2.msra.mxu0 0.0
  %789 = vmatprep.subr.mxu0 0.0
  %790 = vmatpush2.msra.mxu0 0.0
  %791 = vmatprep.mubr.f32.mxu0 0.0
  %792 = vmatmul.mubr.f32.gmra.mxu0 %v725
  %v793 = vpop.f32.mrf.mxu0
  %v794 = vadd.f32 0.0, %v793
  %v795 = vpop.f32.mrf.mxu0
  %796 = vdwg.mxu0
  %v797 = vadd.f32 %v185, %v794
  %v798 = vxor.u32 %v797, 2147483648
  %v799 = vmul.f32 %v798, 1.442695
  %v800 = vpow.pop %v799
  %v801 = vadd.f32 %v800, 1.0
  %v802 = vrcp.pop %v801
  %v803 = vmul.f32 1.0, %v802
  %v804 = vmul.f32 %v803, 2.0
  %v805 = vsub.f32 %v804, 1.0
  %v806 = vmul.f32 %v803, %v715
  %808 = vrot.lane.b32.xlu0 %v805, 64
  %v809 = vpop.permute.xlu0 %808
  %v811 = vmul.f32 %v803, %v809
  %813 = vrot.lane.b32.xlu0 %v811, 32
  %v814 = vpop.permute.xlu0 %813
  %v816 = vadd.f32 %v806, %v814
  %v817 = vtanh.pop %v816
  %819 = vrot.lane.b32.xlu0 %v817, 64
  %v820 = vpop.permute.xlu0 %819
  %v822 = vmul.f32 %v803, %v820
  %824 = vrot.lane.b32.xlu0 %v822, 32
  %v825 = vpop.permute.xlu0 %824
  %v826 = vsel %vm215, %v825, 0
  %828 = vmatprep.subr.mxu0 0.0
  %829 = vmatpush1.msra.mxu0 0.0
  %830 = vmatprep.subr.mxu0 0.0
  %831 = vmatpush1.msra.mxu0 0.0
  %832 = vmatprep.subr.mxu0 0.0
  %833 = vmatpush1.msra.mxu0 0.0
  %834 = vmatprep.subr.mxu0 0.0
  %835 = vmatpush1.msra.mxu0 0.0
  %836 = vmatprep.subr.mxu0 0.0
  %837 = vmatpush1.msra.mxu0 0.0
  %838 = vmatprep.subr.mxu0 0.0
  %839 = vmatpush1.msra.mxu0 0.0
  %840 = vmatprep.subr.mxu0 0.0
  %841 = vmatpush1.msra.mxu0 0.0
  %842 = vmatprep.subr.mxu0 0.0
  %843 = vmatpush1.msra.mxu0 0.0
  %844 = vmatprep.subr.mxu0 0.0
  %845 = vmatpush1.msra.mxu0 0.0
  %846 = vmatprep.subr.mxu0 0.0
  %847 = vmatpush1.msra.mxu0 0.0
  %848 = vmatprep.subr.mxu0 0.0
  %849 = vmatpush1.msra.mxu0 0.0
  %850 = vmatprep.subr.mxu0 0.0
  %851 = vmatpush1.msra.mxu0 0.0
  %852 = vmatprep.subr.mxu0 0.0
  %853 = vmatpush1.msra.mxu0 %v34
  %854 = vmatprep.subr.mxu0 0.0
  %855 = vmatpush1.msra.mxu0 %v33
  %856 = vmatprep.subr.mxu0 0.0
  %857 = vmatpush1.msra.mxu0 %v32
  %858 = vmatprep.subr.mxu0 0.0
  %859 = vmatpush1.msra.mxu0 %v31
  %860 = vmatprep.subr.mxu0 0.0
  %861 = vmatpush2.msra.mxu0 0.0
  %862 = vmatprep.subr.mxu0 0.0
  %863 = vmatpush2.msra.mxu0 0.0
  %864 = vmatprep.subr.mxu0 0.0
  %865 = vmatpush2.msra.mxu0 0.0
  %866 = vmatprep.subr.mxu0 0.0
  %867 = vmatpush2.msra.mxu0 0.0
  %868 = vmatprep.subr.mxu0 0.0
  %869 = vmatpush2.msra.mxu0 0.0
  %870 = vmatprep.subr.mxu0 0.0
  %871 = vmatpush2.msra.mxu0 0.0
  %872 = vmatprep.subr.mxu0 0.0
  %873 = vmatpush2.msra.mxu0 0.0
  %874 = vmatprep.subr.mxu0 0.0
  %875 = vmatpush2.msra.mxu0 0.0
  %876 = vmatprep.subr.mxu0 0.0
  %877 = vmatpush2.msra.mxu0 0.0
  %878 = vmatprep.subr.mxu0 0.0
  %879 = vmatpush2.msra.mxu0 0.0
  %880 = vmatprep.subr.mxu0 0.0
  %881 = vmatpush2.msra.mxu0 0.0
  %882 = vmatprep.subr.mxu0 0.0
  %883 = vmatpush2.msra.mxu0 0.0
  %884 = vmatprep.subr.mxu0 0.0
  %885 = vmatpush2.msra.mxu0 0.0
  %886 = vmatprep.subr.mxu0 0.0
  %887 = vmatpush2.msra.mxu0 0.0
  %888 = vmatprep.subr.mxu0 0.0
  %889 = vmatpush2.msra.mxu0 0.0
  %890 = vmatprep.subr.mxu0 0.0
  %891 = vmatpush2.msra.mxu0 0.0
  %892 = vmatprep.mubr.f32.mxu0 0.0
  %893 = vmatmul.mubr.f32.gmra.mxu0 %v826
  %v894 = vpop.f32.mrf.mxu0
  %v895 = vadd.f32 0.0, %v894
  %v896 = vpop.f32.mrf.mxu0
  %897 = vdwg.mxu0
  %v898 = vadd.f32 %v190, %v895
  %v899 = vxor.u32 %v898, 2147483648
  %v900 = vmul.f32 %v899, 1.442695
  %v901 = vpow.pop %v900
  %v902 = vadd.f32 %v901, 1.0
  %v903 = vrcp.pop %v902
  %v904 = vmul.f32 1.0, %v903
  %v905 = vmul.f32 %v904, 2.0
  %v906 = vsub.f32 %v905, 1.0
  %v907 = vmul.f32 %v904, %v816
  %909 = vrot.lane.b32.xlu0 %v906, 64
  %v910 = vpop.permute.xlu0 %909
  %v912 = vmul.f32 %v904, %v910
  %914 = vrot.lane.b32.xlu0 %v912, 32
  %v915 = vpop.permute.xlu0 %914
  %v917 = vadd.f32 %v907, %v915
  %v918 = vtanh.pop %v917
  %920 = vrot.lane.b32.xlu0 %v918, 64
  %v921 = vpop.permute.xlu0 %920
  %v923 = vmul.f32 %v904, %v921
  %v924 = vld [vmem:[%s5] sm:$0x1]
  %v926 = vlaneseq
  %v927 = vshrl.u32 %v926, 7
  %v928 = vsub.s32 0, %v927
  %v929 = vrot.slane %v924, %v928
  %932 = vrot.lane.b32.xlu0 %v923, 32
  %v933 = vpop.permute.xlu0 %932
  %v934 = vsel %vm215, %v933, 0
  %936 = vmatprep.subr.mxu0 0.0
  %937 = vmatpush1.msra.mxu0 0.0
  %938 = vmatprep.subr.mxu0 0.0
  %939 = vmatpush1.msra.mxu0 0.0
  %940 = vmatprep.subr.mxu0 0.0
  %941 = vmatpush1.msra.mxu0 0.0
  %942 = vmatprep.subr.mxu0 0.0
  %943 = vmatpush1.msra.mxu0 0.0
  %944 = vmatprep.subr.mxu0 0.0
  %945 = vmatpush1.msra.mxu0 0.0
  %946 = vmatprep.subr.mxu0 0.0
  %947 = vmatpush1.msra.mxu0 0.0
  %948 = vmatprep.subr.mxu0 0.0
  %949 = vmatpush1.msra.mxu0 0.0
  %950 = vmatprep.subr.mxu0 0.0
  %951 = vmatpush1.msra.mxu0 0.0
  %952 = vmatprep.subr.mxu0 0.0
  %953 = vmatpush1.msra.mxu0 0.0
  %954 = vmatprep.subr.mxu0 0.0
  %955 = vmatpush1.msra.mxu0 0.0
  %956 = vmatprep.subr.mxu0 0.0
  %957 = vmatpush1.msra.mxu0 0.0
  %958 = vmatprep.subr.mxu0 0.0
  %959 = vmatpush1.msra.mxu0 0.0
  %960 = vmatprep.subr.mxu0 0.0
  %961 = vmatpush1.msra.mxu0 %v34
  %962 = vmatprep.subr.mxu0 0.0
  %963 = vmatpush1.msra.mxu0 %v33
  %964 = vmatprep.subr.mxu0 0.0
  %965 = vmatpush1.msra.mxu0 %v32
  %966 = vmatprep.subr.mxu0 0.0
  %967 = vmatpush1.msra.mxu0 %v31
  %968 = vmatprep.subr.mxu0 0.0
  %969 = vmatpush2.msra.mxu0 0.0
  %970 = vmatprep.subr.mxu0 0.0
  %971 = vmatpush2.msra.mxu0 0.0
  %972 = vmatprep.subr.mxu0 0.0
  %973 = vmatpush2.msra.mxu0 0.0
  %974 = vmatprep.subr.mxu0 0.0
  %975 = vmatpush2.msra.mxu0 0.0
  %976 = vmatprep.subr.mxu0 0.0
  %977 = vmatpush2.msra.mxu0 0.0
  %978 = vmatprep.subr.mxu0 0.0
  %979 = vmatpush2.msra.mxu0 0.0
  %980 = vmatprep.subr.mxu0 0.0
  %981 = vmatpush2.msra.mxu0 0.0
  %982 = vmatprep.subr.mxu0 0.0
  %983 = vmatpush2.msra.mxu0 0.0
  %984 = vmatprep.subr.mxu0 0.0
  %985 = vmatpush2.msra.mxu0 0.0
  %986 = vmatprep.subr.mxu0 0.0
  %987 = vmatpush2.msra.mxu0 0.0
  %988 = vmatprep.subr.mxu0 0.0
  %989 = vmatpush2.msra.mxu0 0.0
  %990 = vmatprep.subr.mxu0 0.0
  %991 = vmatpush2.msra.mxu0 0.0
  %992 = vmatprep.subr.mxu0 0.0
  %993 = vmatpush2.msra.mxu0 0.0
  %994 = vmatprep.subr.mxu0 0.0
  %995 = vmatpush2.msra.mxu0 0.0
  %996 = vmatprep.subr.mxu0 0.0
  %997 = vmatpush2.msra.mxu0 0.0
  %998 = vmatprep.subr.mxu0 0.0
  %999 = vmatpush2.msra.mxu0 0.0
  %1000 = vmatprep.mubr.f32.mxu0 0.0
  %1001 = vmatmul.mubr.f32.gmra.mxu0 %v934
  %v1002 = vpop.f32.mrf.mxu0
  %v1003 = vadd.f32 %v929, %v1002
  %v1004 = vpop.f32.mrf.mxu0
  %1005 = vdwg.mxu0
  %1006 = vmatprep.subr.mxu0 0.0
  %1007 = vmatpush1.msra.mxu0 0.0
  %1008 = vmatprep.subr.mxu0 0.0
  %1009 = vmatpush1.msra.mxu0 0.0
  %1010 = vmatprep.subr.mxu0 0.0
  %1011 = vmatpush1.msra.mxu0 0.0
  %1012 = vmatprep.subr.mxu0 0.0
  %1013 = vmatpush1.msra.mxu0 0.0
  %1014 = vmatprep.subr.mxu0 0.0
  %1015 = vmatpush1.msra.mxu0 0.0
  %1016 = vmatprep.subr.mxu0 0.0
  %1017 = vmatpush1.msra.mxu0 0.0
  %1018 = vmatprep.subr.mxu0 0.0
  %1019 = vmatpush1.msra.mxu0 0.0
  %1020 = vmatprep.subr.mxu0 0.0
  %1021 = vmatpush1.msra.mxu0 0.0
  %1022 = vmatprep.subr.mxu0 0.0
  %1023 = vmatpush1.msra.mxu0 0.0
  %1024 = vmatprep.subr.mxu0 0.0
  %1025 = vmatpush1.msra.mxu0 0.0
  %1026 = vmatprep.subr.mxu0 0.0
  %1027 = vmatpush1.msra.mxu0 0.0
  %1028 = vmatprep.subr.mxu0 0.0
  %1029 = vmatpush1.msra.mxu0 0.0
  %1030 = vmatprep.subr.mxu0 0.0
  %1031 = vmatpush1.msra.mxu0 %v38
  %1032 = vmatprep.subr.mxu0 0.0
  %1033 = vmatpush1.msra.mxu0 %v37
  %1034 = vmatprep.subr.mxu0 0.0
  %1035 = vmatpush1.msra.mxu0 %v36
  %1036 = vmatprep.subr.mxu0 0.0
  %1037 = vmatpush1.msra.mxu0 %v35
  %1038 = vmatprep.subr.mxu0 0.0
  %1039 = vmatpush2.msra.mxu0 0.0
  %1040 = vmatprep.subr.mxu0 0.0
  %1041 = vmatpush2.msra.mxu0 0.0
  %1042 = vmatprep.subr.mxu0 0.0
  %1043 = vmatpush2.msra.mxu0 0.0
  %1044 = vmatprep.subr.mxu0 0.0
  %1045 = vmatpush2.msra.mxu0 0.0
  %1046 = vmatprep.subr.mxu0 0.0
  %1047 = vmatpush2.msra.mxu0 0.0
  %1048 = vmatprep.subr.mxu0 0.0
  %1049 = vmatpush2.msra.mxu0 0.0
  %1050 = vmatprep.subr.mxu0 0.0
  %1051 = vmatpush2.msra.mxu0 0.0
  %1052 = vmatprep.subr.mxu0 0.0
  %1053 = vmatpush2.msra.mxu0 0.0
  %1054 = vmatprep.subr.mxu0 0.0
  %1055 = vmatpush2.msra.mxu0 0.0
  %1056 = vmatprep.subr.mxu0 0.0
  %1057 = vmatpush2.msra.mxu0 0.0
  %1058 = vmatprep.subr.mxu0 0.0
  %1059 = vmatpush2.msra.mxu0 0.0
  %1060 = vmatprep.subr.mxu0 0.0
  %1061 = vmatpush2.msra.mxu0 0.0
  %1062 = vmatprep.subr.mxu0 0.0
  %1063 = vmatpush2.msra.mxu0 0.0
  %1064 = vmatprep.subr.mxu0 0.0
  %1065 = vmatpush2.msra.mxu0 0.0
  %1066 = vmatprep.subr.mxu0 0.0
  %1067 = vmatpush2.msra.mxu0 0.0
  %1068 = vmatprep.subr.mxu0 0.0
  %1069 = vmatpush2.msra.mxu0 0.0
  %1070 = vmatprep.mubr.f32.mxu0 0.0
  %1071 = vmatmul.mubr.f32.gmra.mxu0 %v934
  %v1072 = vpop.f32.mrf.mxu0
  %v1073 = vadd.f32 %v1003, %v1072
  %v1074 = vpop.f32.mrf.mxu0
  %1075 = vdwg.mxu0
  %v1076 = vxor.u32 %v1073, 2147483648
  %v1077 = vmul.f32 %v1076, 1.442695
  %v1078 = vpow.pop %v1077
  %v1079 = vadd.f32 %v1078, 1.0
  %v1080 = vrcp.pop %v1079
  %v1081 = vmul.f32 1.0, %v1080
  %v1082 = vmul.f32 %v1081, 2.0
  %v1083 = vsub.f32 %v1082, 1.0
  %v1084 = vmul.f32 %v1081, %v917
  %1086 = vrot.lane.b32.xlu0 %v1083, 64
  %v1087 = vpop.permute.xlu0 %1086
  %v1089 = vmul.f32 %v1081, %v1087
  %1091 = vrot.lane.b32.xlu0 %v1089, 32
  %v1092 = vpop.permute.xlu0 %1091
  %v1094 = vadd.f32 %v1084, %v1092
  %v1095 = vtanh.pop %v1094
  %1097 = vrot.lane.b32.xlu0 %v1095, 64
  %v1098 = vpop.permute.xlu0 %1097
  %v1100 = vmul.f32 %v1081, %v1098
  %1102 = vrot.lane.b32.xlu0 %v1100, 32
  %v1103 = vpop.permute.xlu0 %1102
  %v1104 = vsel %vm215, %v1103, 0
  %1106 = vmatprep.subr.mxu0 0.0
  %1107 = vmatpush1.msra.mxu0 0.0
  %1108 = vmatprep.subr.mxu0 0.0
  %1109 = vmatpush1.msra.mxu0 0.0
  %1110 = vmatprep.subr.mxu0 0.0
  %1111 = vmatpush1.msra.mxu0 0.0
  %1112 = vmatprep.subr.mxu0 0.0
  %1113 = vmatpush1.msra.mxu0 0.0
  %1114 = vmatprep.subr.mxu0 0.0
  %1115 = vmatpush1.msra.mxu0 0.0
  %1116 = vmatprep.subr.mxu0 0.0
  %1117 = vmatpush1.msra.mxu0 0.0
  %1118 = vmatprep.subr.mxu0 0.0
  %1119 = vmatpush1.msra.mxu0 0.0
  %1120 = vmatprep.subr.mxu0 0.0
  %1121 = vmatpush1.msra.mxu0 0.0
  %1122 = vmatprep.subr.mxu0 0.0
  %1123 = vmatpush1.msra.mxu0 0.0
  %1124 = vmatprep.subr.mxu0 0.0
  %1125 = vmatpush1.msra.mxu0 0.0
  %1126 = vmatprep.subr.mxu0 0.0
  %1127 = vmatpush1.msra.mxu0 0.0
  %1128 = vmatprep.subr.mxu0 0.0
  %1129 = vmatpush1.msra.mxu0 0.0
  %1130 = vmatprep.subr.mxu0 0.0
  %1131 = vmatpush1.msra.mxu0 %v38
  %1132 = vmatprep.subr.mxu0 0.0
  %1133 = vmatpush1.msra.mxu0 %v37
  %1134 = vmatprep.subr.mxu0 0.0
  %1135 = vmatpush1.msra.mxu0 %v36
  %1136 = vmatprep.subr.mxu0 0.0
  %1137 = vmatpush1.msra.mxu0 %v35
  %1138 = vmatprep.subr.mxu0 0.0
  %1139 = vmatpush2.msra.mxu0 0.0
  %1140 = vmatprep.subr.mxu0 0.0
  %1141 = vmatpush2.msra.mxu0 0.0
  %1142 = vmatprep.subr.mxu0 0.0
  %1143 = vmatpush2.msra.mxu0 0.0
  %1144 = vmatprep.subr.mxu0 0.0
  %1145 = vmatpush2.msra.mxu0 0.0
  %1146 = vmatprep.subr.mxu0 0.0
  %1147 = vmatpush2.msra.mxu0 0.0
  %1148 = vmatprep.subr.mxu0 0.0
  %1149 = vmatpush2.msra.mxu0 0.0
  %1150 = vmatprep.subr.mxu0 0.0
  %1151 = vmatpush2.msra.mxu0 0.0
  %1152 = vmatprep.subr.mxu0 0.0
  %1153 = vmatpush2.msra.mxu0 0.0
  %1154 = vmatprep.subr.mxu0 0.0
  %1155 = vmatpush2.msra.mxu0 0.0
  %1156 = vmatprep.subr.mxu0 0.0
  %1157 = vmatpush2.msra.mxu0 0.0
  %1158 = vmatprep.subr.mxu0 0.0
  %1159 = vmatpush2.msra.mxu0 0.0
  %1160 = vmatprep.subr.mxu0 0.0
  %1161 = vmatpush2.msra.mxu0 0.0
  %1162 = vmatprep.subr.mxu0 0.0
  %1163 = vmatpush2.msra.mxu0 0.0
  %1164 = vmatprep.subr.mxu0 0.0
  %1165 = vmatpush2.msra.mxu0 0.0
  %1166 = vmatprep.subr.mxu0 0.0
  %1167 = vmatpush2.msra.mxu0 0.0
  %1168 = vmatprep.subr.mxu0 0.0
  %1169 = vmatpush2.msra.mxu0 0.0
  %1170 = vmatprep.mubr.f32.mxu0 0.0
  %1171 = vmatmul.mubr.f32.gmra.mxu0 %v1104
  %v1172 = vpop.f32.mrf.mxu0
  %v1173 = vadd.f32 %v1003, %v1172
  %v1174 = vpop.f32.mrf.mxu0
  %1175 = vdwg.mxu0
  %v1176 = vxor.u32 %v1173, 2147483648
  %v1177 = vmul.f32 %v1176, 1.442695
  %v1178 = vpow.pop %v1177
  %v1179 = vadd.f32 %v1178, 1.0
  %v1180 = vrcp.pop %v1179
  %v1181 = vmul.f32 1.0, %v1180
  %v1182 = vmul.f32 %v1181, 2.0
  %v1183 = vsub.f32 %v1182, 1.0
  %v1184 = vmul.f32 %v1181, %v917
  %1186 = vrot.lane.b32.xlu0 %v1183, 64
  %v1187 = vpop.permute.xlu0 %1186
  %v1189 = vmul.f32 %v1181, %v1187
  %1191 = vrot.lane.b32.xlu0 %v1189, 32
  %v1192 = vpop.permute.xlu0 %1191
  %v1194 = vadd.f32 %v1184, %v1192
  %v1195 = vtanh.pop %v1194
  %1197 = vrot.lane.b32.xlu0 %v1195, 64
  %v1198 = vpop.permute.xlu0 %1197
  %v1200 = vmul.f32 %v1181, %v1198
  %1202 = vrot.lane.b32.xlu0 %v1200, 32
  %v1203 = vpop.permute.xlu0 %1202
  %v1204 = vsel %vm215, %v1203, 0
  %1206 = vmatprep.subr.mxu0 0.0
  %1207 = vmatpush1.msra.mxu0 0.0
  %1208 = vmatprep.subr.mxu0 0.0
  %1209 = vmatpush1.msra.mxu0 0.0
  %1210 = vmatprep.subr.mxu0 0.0
  %1211 = vmatpush1.msra.mxu0 0.0
  %1212 = vmatprep.subr.mxu0 0.0
  %1213 = vmatpush1.msra.mxu0 0.0
  %1214 = vmatprep.subr.mxu0 0.0
  %1215 = vmatpush1.msra.mxu0 0.0
  %1216 = vmatprep.subr.mxu0 0.0
  %1217 = vmatpush1.msra.mxu0 0.0
  %1218 = vmatprep.subr.mxu0 0.0
  %1219 = vmatpush1.msra.mxu0 0.0
  %1220 = vmatprep.subr.mxu0 0.0
  %1221 = vmatpush1.msra.mxu0 0.0
  %1222 = vmatprep.subr.mxu0 0.0
  %1223 = vmatpush1.msra.mxu0 0.0
  %1224 = vmatprep.subr.mxu0 0.0
  %1225 = vmatpush1.msra.mxu0 0.0
  %1226 = vmatprep.subr.mxu0 0.0
  %1227 = vmatpush1.msra.mxu0 0.0
  %1228 = vmatprep.subr.mxu0 0.0
  %1229 = vmatpush1.msra.mxu0 0.0
  %1230 = vmatprep.subr.mxu0 0.0
  %1231 = vmatpush1.msra.mxu0 %v38
  %1232 = vmatprep.subr.mxu0 0.0
  %1233 = vmatpush1.msra.mxu0 %v37
  %1234 = vmatprep.subr.mxu0 0.0
  %1235 = vmatpush1.msra.mxu0 %v36
  %1236 = vmatprep.subr.mxu0 0.0
  %1237 = vmatpush1.msra.mxu0 %v35
  %1238 = vmatprep.subr.mxu0 0.0
  %1239 = vmatpush2.msra.mxu0 0.0
  %1240 = vmatprep.subr.mxu0 0.0
  %1241 = vmatpush2.msra.mxu0 0.0
  %1242 = vmatprep.subr.mxu0 0.0
  %1243 = vmatpush2.msra.mxu0 0.0
  %1244 = vmatprep.subr.mxu0 0.0
  %1245 = vmatpush2.msra.mxu0 0.0
  %1246 = vmatprep.subr.mxu0 0.0
  %1247 = vmatpush2.msra.mxu0 0.0
  %1248 = vmatprep.subr.mxu0 0.0
  %1249 = vmatpush2.msra.mxu0 0.0
  %1250 = vmatprep.subr.mxu0 0.0
  %1251 = vmatpush2.msra.mxu0 0.0
  %1252 = vmatprep.subr.mxu0 0.0
  %1253 = vmatpush2.msra.mxu0 0.0
  %1254 = vmatprep.subr.mxu0 0.0
  %1255 = vmatpush2.msra.mxu0 0.0
  %1256 = vmatprep.subr.mxu0 0.0
  %1257 = vmatpush2.msra.mxu0 0.0
  %1258 = vmatprep.subr.mxu0 0.0
  %1259 = vmatpush2.msra.mxu0 0.0
  %1260 = vmatprep.subr.mxu0 0.0
  %1261 = vmatpush2.msra.mxu0 0.0
  %1262 = vmatprep.subr.mxu0 0.0
  %1263 = vmatpush2.msra.mxu0 0.0
  %1264 = vmatprep.subr.mxu0 0.0
  %1265 = vmatpush2.msra.mxu0 0.0
  %1266 = vmatprep.subr.mxu0 0.0
  %1267 = vmatpush2.msra.mxu0 0.0
  %1268 = vmatprep.subr.mxu0 0.0
  %1269 = vmatpush2.msra.mxu0 0.0
  %1270 = vmatprep.mubr.f32.mxu0 0.0
  %1271 = vmatmul.mubr.f32.gmra.mxu0 %v1204
  %v1272 = vpop.f32.mrf.mxu0
  %v1273 = vadd.f32 %v1003, %v1272
  %v1274 = vpop.f32.mrf.mxu0
  %1275 = vdwg.mxu0
  %v1276 = vxor.u32 %v1273, 2147483648
  %v1277 = vmul.f32 %v1276, 1.442695
  %v1278 = vpow.pop %v1277
  %v1279 = vadd.f32 %v1278, 1.0
  %v1280 = vrcp.pop %v1279
  %v1281 = vmul.f32 1.0, %v1280
  %v1282 = vmul.f32 %v1281, 2.0
  %v1283 = vsub.f32 %v1282, 1.0
  %v1284 = vmul.f32 %v1281, %v917
  %1286 = vrot.lane.b32.xlu0 %v1283, 64
  %v1287 = vpop.permute.xlu0 %1286
  %v1289 = vmul.f32 %v1281, %v1287
  %1291 = vrot.lane.b32.xlu0 %v1289, 32
  %v1292 = vpop.permute.xlu0 %1291
  %v1294 = vadd.f32 %v1284, %v1292
  %v1295 = vtanh.pop %v1294
  %1297 = vrot.lane.b32.xlu0 %v1295, 64
  %v1298 = vpop.permute.xlu0 %1297
  %v1300 = vmul.f32 %v1281, %v1298
  %v1301 = vld [vmem:[#allocation2] sm:$0x1]
  %v1303 = vlaneseq
  %v1304 = vshrl.u32 %v1303, 7
  %v1305 = vsub.s32 0, %v1304
  %v1306 = vrot.slane %v1301, %v1305
  %1309 = vrot.lane.b32.xlu0 %v1300, 32
  %v1310 = vpop.permute.xlu0 %1309
  %v1311 = vsel %vm215, %v1310, 0
  %1313 = vmatprep.subr.mxu0 0.0
  %1314 = vmatpush1.msra.mxu0 0.0
  %1315 = vmatprep.subr.mxu0 0.0
  %1316 = vmatpush1.msra.mxu0 0.0
  %1317 = vmatprep.subr.mxu0 0.0
  %1318 = vmatpush1.msra.mxu0 0.0
  %1319 = vmatprep.subr.mxu0 0.0
  %1320 = vmatpush1.msra.mxu0 0.0
  %1321 = vmatprep.subr.mxu0 0.0
  %1322 = vmatpush1.msra.mxu0 0.0
  %1323 = vmatprep.subr.mxu0 0.0
  %1324 = vmatpush1.msra.mxu0 0.0
  %1325 = vmatprep.subr.mxu0 0.0
  %1326 = vmatpush1.msra.mxu0 0.0
  %1327 = vmatprep.subr.mxu0 0.0
  %1328 = vmatpush1.msra.mxu0 0.0
  %1329 = vmatprep.subr.mxu0 0.0
  %1330 = vmatpush1.msra.mxu0 0.0
  %1331 = vmatprep.subr.mxu0 0.0
  %1332 = vmatpush1.msra.mxu0 0.0
  %1333 = vmatprep.subr.mxu0 0.0
  %1334 = vmatpush1.msra.mxu0 0.0
  %1335 = vmatprep.subr.mxu0 0.0
  %1336 = vmatpush1.msra.mxu0 0.0
  %1337 = vmatprep.subr.mxu0 0.0
  %1338 = vmatpush1.msra.mxu0 %v42
  %1339 = vmatprep.subr.mxu0 0.0
  %1340 = vmatpush1.msra.mxu0 %v41
  %1341 = vmatprep.subr.mxu0 0.0
  %1342 = vmatpush1.msra.mxu0 %v40
  %1343 = vmatprep.subr.mxu0 0.0
  %1344 = vmatpush1.msra.mxu0 %v39
  %1345 = vmatprep.subr.mxu0 0.0
  %1346 = vmatpush2.msra.mxu0 0.0
  %1347 = vmatprep.subr.mxu0 0.0
  %1348 = vmatpush2.msra.mxu0 0.0
  %1349 = vmatprep.subr.mxu0 0.0
  %1350 = vmatpush2.msra.mxu0 0.0
  %1351 = vmatprep.subr.mxu0 0.0
  %1352 = vmatpush2.msra.mxu0 0.0
  %1353 = vmatprep.subr.mxu0 0.0
  %1354 = vmatpush2.msra.mxu0 0.0
  %1355 = vmatprep.subr.mxu0 0.0
  %1356 = vmatpush2.msra.mxu0 0.0
  %1357 = vmatprep.subr.mxu0 0.0
  %1358 = vmatpush2.msra.mxu0 0.0
  %1359 = vmatprep.subr.mxu0 0.0
  %1360 = vmatpush2.msra.mxu0 0.0
  %1361 = vmatprep.subr.mxu0 0.0
  %1362 = vmatpush2.msra.mxu0 0.0
  %1363 = vmatprep.subr.mxu0 0.0
  %1364 = vmatpush2.msra.mxu0 0.0
  %1365 = vmatprep.subr.mxu0 0.0
  %1366 = vmatpush2.msra.mxu0 0.0
  %1367 = vmatprep.subr.mxu0 0.0
  %1368 = vmatpush2.msra.mxu0 0.0
  %1369 = vmatprep.subr.mxu0 0.0
  %1370 = vmatpush2.msra.mxu0 0.0
  %1371 = vmatprep.subr.mxu0 0.0
  %1372 = vmatpush2.msra.mxu0 0.0
  %1373 = vmatprep.subr.mxu0 0.0
  %1374 = vmatpush2.msra.mxu0 0.0
  %1375 = vmatprep.subr.mxu0 0.0
  %1376 = vmatpush2.msra.mxu0 0.0
  %1377 = vmatprep.mubr.f32.mxu0 0.0
  %1378 = vmatmul.mubr.f32.gmra.mxu0 %v934
  %v1379 = vpop.f32.mrf.mxu0
  %v1380 = vadd.f32 %v1306, %v1379
  %v1381 = vpop.f32.mrf.mxu0
  %1382 = vmatprep.mubr.f32.mxu0 0.0
  %1383 = vmatmul.mubr.f32.gmra.mxu0 %v1104
  %v1384 = vpop.f32.mrf.mxu0
  %v1385 = vadd.f32 %v1306, %v1384
  %v1386 = vpop.f32.mrf.mxu0
  %1387 = vmatprep.mubr.f32.mxu0 0.0
  %1388 = vmatmul.mubr.f32.gmra.mxu0 %v1204
  %v1389 = vpop.f32.mrf.mxu0
  %v1390 = vadd.f32 %v1306, %v1389
  %v1391 = vpop.f32.mrf.mxu0
  %1392 = vmatprep.mubr.f32.mxu0 0.0
  %1393 = vmatmul.mubr.f32.gmra.mxu0 %v1311
  %v1394 = vpop.f32.mrf.mxu0
  %v1395 = vadd.f32 %v1306, %v1394
  %v1396 = vpop.f32.mrf.mxu0
  %1397 = vdwg.mxu0
  %1399 = vrot.lane.b32.xlu0 %v1385, 1
  %v1400 = vpop.permute.xlu0 %1399
  %1403 = vrot.lane.b32.xlu0 %v1390, 2
  %v1404 = vpop.permute.xlu0 %1403
  %1407 = vrot.lane.b32.xlu0 %v1395, 3
  %v1408 = vpop.permute.xlu0 %1407
  %v1410 = vsel %vm59, %v1380, %v1400
  %vm1411 = vcmask 15360
  %v1412 = vsel %vm1411, %v1410, %v1404
  %vm1413 = vcmask 23552
  %v1414 = vsel %vm1413, %v1412, %v1408
  %vm1415 = vcmask 31744
  %1416 = vst.msk [vmem:[%s8] sm:$0xff] %vm1415, %v1414
  // Predicated region
  $region34: #{tpu_custom_call.1} parent=0 // pred_check
    _
  $region35: #{tpu_custom_call.1} parent=0 // pred_check_branch
    %1418 = sbr.rel (0) target = $region37
  $region36: #{tpu_custom_call.1} parent=0 // pred_region
    _
  $region37: #{tpu_custom_call.1} parent=0 // pred_fallthru
    _
  // Predicated region
  $region38: #{tpu_custom_call.1} parent=0 // pred_check
    _
  $region39: #{tpu_custom_call.1} parent=0 // pred_check_branch
    %1420 = sbr.rel (0) target = $region41
  $region40: #{tpu_custom_call.1} parent=0 // pred_region
    _
  $region41: #{tpu_custom_call.1} parent=0 // pred_fallthru
    _

</llo_original>
